<compile_context>
chip_gen: v5e
topology: v5e:2x2
jax: 0.10.0
libtpu: 0.0.40
codegen_flags: <defaults>
</compile_context>

<pallas_src>
import math
from functools import partial

import jax
import jax.numpy as jnp
from jax.experimental import pallas as pl
from jax.experimental.pallas import tpu as pltpu


def _direct_conv_kernel(x_ref, w_ref, shift_ref, o_ref, *,
                        kh, kw, sh, sw, th, wout, cin, apply_relu):
    # x_ref:     (1, Hp2, Wp, Cin)   full padded image (resident across co/h steps)
    # w_ref:     (kh*kw, Cin, tn)    per-tap weight slab, BN scale pre-folded
    # shift_ref: (1, tn)             folded conv-bias + BN shift (f32)
    # o_ref:     (1, TH, Wout, tn)
    tn = o_ref.shape[-1]
    h0 = pl.multiple_of(pl.program_id(2) * (th * sh), th * sh)

    acc = jnp.zeros((th * wout, tn), jnp.float32)
    for i in range(kh):
        for j in range(kw):
            rows = pl.ds(h0 + i, th) if sh == 1 else pl.ds(h0 + i, th, stride=sh)
            cols = pl.ds(j, wout) if sw == 1 else pl.ds(j, wout, stride=sw)
            x_tap = x_ref[0, rows, cols, :]                  # (th, wout, cin)
            x2 = x_tap.reshape(th * wout, cin)
            acc += jnp.dot(x2, w_ref[i * kw + j],
                           preferred_element_type=jnp.float32)

    y = acc + shift_ref[...]                                  # f32 epilogue
    if apply_relu:
        y = jnp.maximum(y, 0.0)
    o_ref[0] = y.reshape(th, wout, tn).astype(o_ref.dtype)


def _pad_to(v, m):
    return ((v + m - 1) // m) * m


def conv2d_bn_relu(x, weight, conv_bias, bn_gamma, bn_beta, bn_mean, bn_var,
                   *, stride=(1, 1), same_padding=True, relu=True, bn=True,
                   eps=1e-5, compute_dtype=jnp.bfloat16, target_rows=512):
    N, C, H, W = x.shape
    Cout, Cin, kh, kw = weight.shape
    assert C == Cin
    sh, sw = stride
    p0 = (kh - 1) // 2 if same_padding else 0
    p1 = (kw - 1) // 2 if same_padding else 0
    Hout = (H + 2 * p0 - kh) // sh + 1
    Wout = (W + 2 * p1 - kw) // sw + 1

    # ---- fold conv bias + BatchNorm (eval) into per-channel scale/shift ----
    if bn:
        s = bn_gamma.astype(jnp.float32) / jnp.sqrt(bn_var.astype(jnp.float32) + eps)
        t = bn_beta.astype(jnp.float32) - bn_mean.astype(jnp.float32) * s
    else:
        s = jnp.ones((Cout,), jnp.float32)
        t = jnp.zeros((Cout,), jnp.float32)
    b = (conv_bias.astype(jnp.float32) if conv_bias is not None
         else jnp.zeros((Cout,), jnp.float32))

    # ---- tiling ----
    Cout_pad = _pad_to(Cout, 128)
    tn = 256 if (Cout_pad % 256 == 0) else 128
    n_co = Cout_pad // tn
    th = max(1, min(Hout, max(1, target_rows // max(Wout, 1))))
    n_h = -(-Hout // th)
    Hout_pad = n_h * th

    # ---- NHWC + zero-pad (extra bottom rows keep padded output tiles in-bounds) ----
    Hp_needed = (Hout_pad - 1) * sh + kh
    Wp = W + 2 * p1
    extra_h = max(0, Hp_needed - (H + 2 * p0))
    Hp2 = H + 2 * p0 + extra_h
    xp = jnp.transpose(x, (0, 2, 3, 1))
    xp = jnp.pad(xp, ((0, 0), (p0, p0 + extra_h), (p1, p1), (0, 0)))
    xp = xp.astype(compute_dtype)

    # ---- weights: OIHW -> (kh*kw, Cin, Cout_pad), BN scale folded; MXU dtype ----
    wt = jnp.transpose(weight, (2, 3, 1, 0)).reshape(kh * kw, Cin, Cout)
    wt = wt.astype(jnp.float32) * s[None, None, :]
    wt = jnp.pad(wt, ((0, 0), (0, 0), (0, Cout_pad - Cout))).astype(compute_dtype)
    shift = jnp.pad(b * s + t, (0, Cout_pad - Cout)).reshape(1, Cout_pad).astype(jnp.float32)

    kernel = partial(_direct_conv_kernel, kh=kh, kw=kw, sh=sh, sw=sw,
                     th=th, wout=Wout, cin=Cin, apply_relu=relu)

    # rough lane/sublane-padded, double-buffered VMEM estimate; raise limit only if needed
    def _pb(shape, dtype):
        ss = list(shape)
        ss[-1] = _pad_to(ss[-1], 128)
        if len(ss) >= 2:
            ss[-2] = _pad_to(ss[-2], 8)
        return math.prod(ss) * jnp.dtype(dtype).itemsize

    vmem_est = (2 * _pb((1, Hp2, Wp, Cin), compute_dtype)
                + 2 * _pb((kh * kw, Cin, tn), compute_dtype)
                + 2 * _pb((1, tn), jnp.float32)
                + 2 * _pb((1, th, Wout, tn), x.dtype)
                + _pb((th * Wout, tn), jnp.float32))
    ckw = dict(dimension_semantics=("parallel", "parallel", "parallel"))
    if vmem_est > 24 * 1024 * 1024:
        # TODO(synk): very large images (full padded image > VMEM, esp. v7x's 64 MiB)
        # would need an H-tiled halo input pipeline instead of a resident full image.
        ckw["vmem_limit_bytes"] = min(int(vmem_est * 3 // 2), 96 * 1024 * 1024)

    out = pl.pallas_call(
        kernel,
        out_shape=jax.ShapeDtypeStruct((N, Hout_pad, Wout, Cout_pad), x.dtype),
        grid_spec=pltpu.PrefetchScalarGridSpec(
            num_scalar_prefetch=0,
            grid=(N, n_co, n_h),
            in_specs=[
                pl.BlockSpec((1, Hp2, Wp, Cin), lambda n, co, h: (n, 0, 0, 0)),
                pl.BlockSpec((kh * kw, Cin, tn), lambda n, co, h: (0, 0, co)),
                pl.BlockSpec((1, tn), lambda n, co, h: (0, co)),
            ],
            out_specs=pl.BlockSpec((1, th, Wout, tn), lambda n, co, h: (n, h, 0, co)),
        ),
        compiler_params=pltpu.CompilerParams(**ckw),
    )(xp, wt, shift)

    out = out[:, :Hout, :, :Cout]               # drop H / Cout padding (still NHWC)
    out = jnp.transpose(out, (0, 3, 1, 2))      # back to NCHW to match PyTorch
    # TODO(synk): F.dropout(p=0.3) is identity in eval mode; training-mode RNG dropout omitted.
    return out


if __name__ == "__main__":
    key = jax.random.PRNGKey(0)
    kx, kw_, kg, kb, km, kv = jax.random.split(key, 6)

    N, Cin, H, W = 2, 4, 16, 16
    Cout, kh, kw = 8, 3, 3

    x = jax.random.normal(kx, (N, Cin, H, W), jnp.float32)
    # Deterministic parameter init (Conv2d default: if_bias=False, bn=True, relu=True)
    fan_in = Cin * kh * kw
    weight = jax.random.uniform(kw_, (Cout, Cin, kh, kw), jnp.float32,
                                -1.0 / math.sqrt(fan_in), 1.0 / math.sqrt(fan_in))
    conv_bias = None
    bn_gamma = jax.random.normal(kg, (Cout,), jnp.float32) * 0.1 + 1.0
    bn_beta = jax.random.normal(kb, (Cout,), jnp.float32) * 0.1
    bn_mean = jax.random.normal(km, (Cout,), jnp.float32) * 0.1
    bn_var = jax.random.uniform(kv, (Cout,), jnp.float32, 0.5, 1.5)

    # f32 path (tight check) and bf16 MXU fast path (looser tolerance).
    y32 = conv2d_bn_relu(x, weight, conv_bias, bn_gamma, bn_beta, bn_mean, bn_var,
                         compute_dtype=jnp.float32)
    y16 = conv2d_bn_relu(x, weight, conv_bias, bn_gamma, bn_beta, bn_mean, bn_var)
    y32, y16 = jax.block_until_ready((y32, y16))

    # Pure-JAX reference (same eval-mode semantics).
    ref = jax.lax.conv_general_dilated(
        x, weight, window_strides=(1, 1), padding=[(1, 1), (1, 1)],
        dimension_numbers=("NCHW", "OIHW", "NCHW"))
    s = bn_gamma / jnp.sqrt(bn_var + 1e-5)
    t = bn_beta - bn_mean * s
    ref = jnp.maximum(ref * s.reshape(1, -1, 1, 1) + t.reshape(1, -1, 1, 1), 0.0)

    assert y32.shape == (N, Cout, H, W)
    assert y16.shape == (N, Cout, H, W)
    assert jnp.allclose(y32, ref, atol=1e-4, rtol=1e-4), float(jnp.max(jnp.abs(y32 - ref)))
    assert jnp.allclose(y16, ref, atol=3e-2, rtol=3e-2), float(jnp.max(jnp.abs(y16 - ref)))

    print("KERNEL_OK")
</pallas_src>

<mosaic_0001>
module attributes {stable_mosaic.version = 11 : i64} {
  func.func @_direct_conv_kernel(%arg0: i32, %arg1: i32, %arg2: i32, %arg3: memref<1x18x18x4xf32, #tpu.memory_space<vmem>>, %arg4: memref<9x4x128xf32, #tpu.memory_space<vmem>>, %arg5: memref<1x128xf32, #tpu.memory_space<vmem>>, %arg6: memref<1x16x16x128xf32, #tpu.memory_space<vmem>>) attributes {dimension_semantics = [#tpu.dimension_semantics<parallel>, #tpu.dimension_semantics<parallel>, #tpu.dimension_semantics<parallel>], iteration_bounds = array<i64: 2, 1, 1>, scalar_prefetch = 0 : i64, scratch_operands = 0 : i64, tpu.core_type = #tpu.core_type<tc>, window_params = [{transform_indices = @transform_0, window_bounds = array<i64: 1, 18, 18, 4>}, {transform_indices = @transform_1, window_bounds = array<i64: 9, 4, 128>}, {transform_indices = @transform_2, window_bounds = array<i64: 1, 128>}, {transform_indices = @transform_3, window_bounds = array<i64: 1, 16, 16, 128>}]} {
    %c16_i32 = arith.constant 16 : i32
    %0 = arith.muli %arg2, %c16_i32 : i32
    %1 = tpu.assume_multiple %0, 16 : i32
    %cst = arith.constant 0.000000e+00 : f32
    %2 = vector.broadcast %cst : f32 to vector<256x128xf32>
    %c0_i32 = arith.constant 0 : i32
    %3 = arith.addi %1, %c0_i32 : i32
    %c0 = arith.constant 0 : index
    %4 = arith.index_cast %3 : i32 to index
    %c0_0 = arith.constant 0 : index
    %c0_1 = arith.constant 0 : index
    %5 = vector.load %arg3[%c0, %4, %c0_0, %c0_1] : memref<1x18x18x4xf32, #tpu.memory_space<vmem>>, vector<1x16x16x4xf32>
    %6 = vector.shape_cast %5 : vector<1x16x16x4xf32> to vector<16x16x4xf32>
    %7 = vector.shape_cast %6 : vector<16x16x4xf32> to vector<256x4xf32>
    %c0_2 = arith.constant 0 : index
    %c0_3 = arith.constant 0 : index
    %c0_4 = arith.constant 0 : index
    %8 = vector.load %arg4[%c0_2, %c0_3, %c0_4] : memref<9x4x128xf32, #tpu.memory_space<vmem>>, vector<1x4x128xf32>
    %9 = vector.shape_cast %8 : vector<1x4x128xf32> to vector<4x128xf32>
    %cst_5 = arith.constant dense<0.000000e+00> : vector<256x128xf32>
    %10 = tpu.matmul %7, %9, %cst_5 {dimension_numbers = #tpu.dot_dimension_numbers<[1], [0], [0], [1], [0, 0, 1, 1], [], []>} : vector<256x4xf32>, vector<4x128xf32>, vector<256x128xf32> -> vector<256x128xf32>
    %11 = arith.addf %2, %10 : vector<256x128xf32>
    %c0_i32_6 = arith.constant 0 : i32
    %12 = arith.addi %1, %c0_i32_6 : i32
    %c0_7 = arith.constant 0 : index
    %13 = arith.index_cast %12 : i32 to index
    %c1 = arith.constant 1 : index
    %c0_8 = arith.constant 0 : index
    %14 = vector.load %arg3[%c0_7, %13, %c1, %c0_8] : memref<1x18x18x4xf32, #tpu.memory_space<vmem>>, vector<1x16x16x4xf32>
    %15 = vector.shape_cast %14 : vector<1x16x16x4xf32> to vector<16x16x4xf32>
    %16 = vector.shape_cast %15 : vector<16x16x4xf32> to vector<256x4xf32>
    %c1_9 = arith.constant 1 : index
    %c0_10 = arith.constant 0 : index
    %c0_11 = arith.constant 0 : index
    %17 = vector.load %arg4[%c1_9, %c0_10, %c0_11] : memref<9x4x128xf32, #tpu.memory_space<vmem>>, vector<1x4x128xf32>
    %18 = vector.shape_cast %17 : vector<1x4x128xf32> to vector<4x128xf32>
    %cst_12 = arith.constant dense<0.000000e+00> : vector<256x128xf32>
    %19 = tpu.matmul %16, %18, %cst_12 {dimension_numbers = #tpu.dot_dimension_numbers<[1], [0], [0], [1], [0, 0, 1, 1], [], []>} : vector<256x4xf32>, vector<4x128xf32>, vector<256x128xf32> -> vector<256x128xf32>
    %20 = arith.addf %11, %19 : vector<256x128xf32>
    %c0_i32_13 = arith.constant 0 : i32
    %21 = arith.addi %1, %c0_i32_13 : i32
    %c0_14 = arith.constant 0 : index
    %22 = arith.index_cast %21 : i32 to index
    %c2 = arith.constant 2 : index
    %c0_15 = arith.constant 0 : index
    %23 = vector.load %arg3[%c0_14, %22, %c2, %c0_15] : memref<1x18x18x4xf32, #tpu.memory_space<vmem>>, vector<1x16x16x4xf32>
    %24 = vector.shape_cast %23 : vector<1x16x16x4xf32> to vector<16x16x4xf32>
    %25 = vector.shape_cast %24 : vector<16x16x4xf32> to vector<256x4xf32>
    %c2_16 = arith.constant 2 : index
    %c0_17 = arith.constant 0 : index
    %c0_18 = arith.constant 0 : index
    %26 = vector.load %arg4[%c2_16, %c0_17, %c0_18] : memref<9x4x128xf32, #tpu.memory_space<vmem>>, vector<1x4x128xf32>
    %27 = vector.shape_cast %26 : vector<1x4x128xf32> to vector<4x128xf32>
    %cst_19 = arith.constant dense<0.000000e+00> : vector<256x128xf32>
    %28 = tpu.matmul %25, %27, %cst_19 {dimension_numbers = #tpu.dot_dimension_numbers<[1], [0], [0], [1], [0, 0, 1, 1], [], []>} : vector<256x4xf32>, vector<4x128xf32>, vector<256x128xf32> -> vector<256x128xf32>
    %29 = arith.addf %20, %28 : vector<256x128xf32>
    %c1_i32 = arith.constant 1 : i32
    %30 = arith.addi %1, %c1_i32 : i32
    %c0_20 = arith.constant 0 : index
    %31 = arith.index_cast %30 : i32 to index
    %c0_21 = arith.constant 0 : index
    %c0_22 = arith.constant 0 : index
    %32 = vector.load %arg3[%c0_20, %31, %c0_21, %c0_22] : memref<1x18x18x4xf32, #tpu.memory_space<vmem>>, vector<1x16x16x4xf32>
    %33 = vector.shape_cast %32 : vector<1x16x16x4xf32> to vector<16x16x4xf32>
    %34 = vector.shape_cast %33 : vector<16x16x4xf32> to vector<256x4xf32>
    %c3 = arith.constant 3 : index
    %c0_23 = arith.constant 0 : index
    %c0_24 = arith.constant 0 : index
    %35 = vector.load %arg4[%c3, %c0_23, %c0_24] : memref<9x4x128xf32, #tpu.memory_space<vmem>>, vector<1x4x128xf32>
    %36 = vector.shape_cast %35 : vector<1x4x128xf32> to vector<4x128xf32>
    %cst_25 = arith.constant dense<0.000000e+00> : vector<256x128xf32>
    %37 = tpu.matmul %34, %36, %cst_25 {dimension_numbers = #tpu.dot_dimension_numbers<[1], [0], [0], [1], [0, 0, 1, 1], [], []>} : vector<256x4xf32>, vector<4x128xf32>, vector<256x128xf32> -> vector<256x128xf32>
    %38 = arith.addf %29, %37 : vector<256x128xf32>
    %c1_i32_26 = arith.constant 1 : i32
    %39 = arith.addi %1, %c1_i32_26 : i32
    %c0_27 = arith.constant 0 : index
    %40 = arith.index_cast %39 : i32 to index
    %c1_28 = arith.constant 1 : index
    %c0_29 = arith.constant 0 : index
    %41 = vector.load %arg3[%c0_27, %40, %c1_28, %c0_29] : memref<1x18x18x4xf32, #tpu.memory_space<vmem>>, vector<1x16x16x4xf32>
    %42 = vector.shape_cast %41 : vector<1x16x16x4xf32> to vector<16x16x4xf32>
    %43 = vector.shape_cast %42 : vector<16x16x4xf32> to vector<256x4xf32>
    %c4 = arith.constant 4 : index
    %c0_30 = arith.constant 0 : index
    %c0_31 = arith.constant 0 : index
    %44 = vector.load %arg4[%c4, %c0_30, %c0_31] : memref<9x4x128xf32, #tpu.memory_space<vmem>>, vector<1x4x128xf32>
    %45 = vector.shape_cast %44 : vector<1x4x128xf32> to vector<4x128xf32>
    %cst_32 = arith.constant dense<0.000000e+00> : vector<256x128xf32>
    %46 = tpu.matmul %43, %45, %cst_32 {dimension_numbers = #tpu.dot_dimension_numbers<[1], [0], [0], [1], [0, 0, 1, 1], [], []>} : vector<256x4xf32>, vector<4x128xf32>, vector<256x128xf32> -> vector<256x128xf32>
    %47 = arith.addf %38, %46 : vector<256x128xf32>
    %c1_i32_33 = arith.constant 1 : i32
    %48 = arith.addi %1, %c1_i32_33 : i32
    %c0_34 = arith.constant 0 : index
    %49 = arith.index_cast %48 : i32 to index
    %c2_35 = arith.constant 2 : index
    %c0_36 = arith.constant 0 : index
    %50 = vector.load %arg3[%c0_34, %49, %c2_35, %c0_36] : memref<1x18x18x4xf32, #tpu.memory_space<vmem>>, vector<1x16x16x4xf32>
    %51 = vector.shape_cast %50 : vector<1x16x16x4xf32> to vector<16x16x4xf32>
    %52 = vector.shape_cast %51 : vector<16x16x4xf32> to vector<256x4xf32>
    %c5 = arith.constant 5 : index
    %c0_37 = arith.constant 0 : index
    %c0_38 = arith.constant 0 : index
    %53 = vector.load %arg4[%c5, %c0_37, %c0_38] : memref<9x4x128xf32, #tpu.memory_space<vmem>>, vector<1x4x128xf32>
    %54 = vector.shape_cast %53 : vector<1x4x128xf32> to vector<4x128xf32>
    %cst_39 = arith.constant dense<0.000000e+00> : vector<256x128xf32>
    %55 = tpu.matmul %52, %54, %cst_39 {dimension_numbers = #tpu.dot_dimension_numbers<[1], [0], [0], [1], [0, 0, 1, 1], [], []>} : vector<256x4xf32>, vector<4x128xf32>, vector<256x128xf32> -> vector<256x128xf32>
    %56 = arith.addf %47, %55 : vector<256x128xf32>
    %c2_i32 = arith.constant 2 : i32
    %57 = arith.addi %1, %c2_i32 : i32
    %c0_40 = arith.constant 0 : index
    %58 = arith.index_cast %57 : i32 to index
    %c0_41 = arith.constant 0 : index
    %c0_42 = arith.constant 0 : index
    %59 = vector.load %arg3[%c0_40, %58, %c0_41, %c0_42] : memref<1x18x18x4xf32, #tpu.memory_space<vmem>>, vector<1x16x16x4xf32>
    %60 = vector.shape_cast %59 : vector<1x16x16x4xf32> to vector<16x16x4xf32>
    %61 = vector.shape_cast %60 : vector<16x16x4xf32> to vector<256x4xf32>
    %c6 = arith.constant 6 : index
    %c0_43 = arith.constant 0 : index
    %c0_44 = arith.constant 0 : index
    %62 = vector.load %arg4[%c6, %c0_43, %c0_44] : memref<9x4x128xf32, #tpu.memory_space<vmem>>, vector<1x4x128xf32>
    %63 = vector.shape_cast %62 : vector<1x4x128xf32> to vector<4x128xf32>
    %cst_45 = arith.constant dense<0.000000e+00> : vector<256x128xf32>
    %64 = tpu.matmul %61, %63, %cst_45 {dimension_numbers = #tpu.dot_dimension_numbers<[1], [0], [0], [1], [0, 0, 1, 1], [], []>} : vector<256x4xf32>, vector<4x128xf32>, vector<256x128xf32> -> vector<256x128xf32>
    %65 = arith.addf %56, %64 : vector<256x128xf32>
    %c2_i32_46 = arith.constant 2 : i32
    %66 = arith.addi %1, %c2_i32_46 : i32
    %c0_47 = arith.constant 0 : index
    %67 = arith.index_cast %66 : i32 to index
    %c1_48 = arith.constant 1 : index
    %c0_49 = arith.constant 0 : index
    %68 = vector.load %arg3[%c0_47, %67, %c1_48, %c0_49] : memref<1x18x18x4xf32, #tpu.memory_space<vmem>>, vector<1x16x16x4xf32>
    %69 = vector.shape_cast %68 : vector<1x16x16x4xf32> to vector<16x16x4xf32>
    %70 = vector.shape_cast %69 : vector<16x16x4xf32> to vector<256x4xf32>
    %c7 = arith.constant 7 : index
    %c0_50 = arith.constant 0 : index
    %c0_51 = arith.constant 0 : index
    %71 = vector.load %arg4[%c7, %c0_50, %c0_51] : memref<9x4x128xf32, #tpu.memory_space<vmem>>, vector<1x4x128xf32>
    %72 = vector.shape_cast %71 : vector<1x4x128xf32> to vector<4x128xf32>
    %cst_52 = arith.constant dense<0.000000e+00> : vector<256x128xf32>
    %73 = tpu.matmul %70, %72, %cst_52 {dimension_numbers = #tpu.dot_dimension_numbers<[1], [0], [0], [1], [0, 0, 1, 1], [], []>} : vector<256x4xf32>, vector<4x128xf32>, vector<256x128xf32> -> vector<256x128xf32>
    %74 = arith.addf %65, %73 : vector<256x128xf32>
    %c2_i32_53 = arith.constant 2 : i32
    %75 = arith.addi %1, %c2_i32_53 : i32
    %c0_54 = arith.constant 0 : index
    %76 = arith.index_cast %75 : i32 to index
    %c2_55 = arith.constant 2 : index
    %c0_56 = arith.constant 0 : index
    %77 = vector.load %arg3[%c0_54, %76, %c2_55, %c0_56] : memref<1x18x18x4xf32, #tpu.memory_space<vmem>>, vector<1x16x16x4xf32>
    %78 = vector.shape_cast %77 : vector<1x16x16x4xf32> to vector<16x16x4xf32>
    %79 = vector.shape_cast %78 : vector<16x16x4xf32> to vector<256x4xf32>
    %c8 = arith.constant 8 : index
    %c0_57 = arith.constant 0 : index
    %c0_58 = arith.constant 0 : index
    %80 = vector.load %arg4[%c8, %c0_57, %c0_58] : memref<9x4x128xf32, #tpu.memory_space<vmem>>, vector<1x4x128xf32>
    %81 = vector.shape_cast %80 : vector<1x4x128xf32> to vector<4x128xf32>
    %cst_59 = arith.constant dense<0.000000e+00> : vector<256x128xf32>
    %82 = tpu.matmul %79, %81, %cst_59 {dimension_numbers = #tpu.dot_dimension_numbers<[1], [0], [0], [1], [0, 0, 1, 1], [], []>} : vector<256x4xf32>, vector<4x128xf32>, vector<256x128xf32> -> vector<256x128xf32>
    %83 = arith.addf %74, %82 : vector<256x128xf32>
    %c0_60 = arith.constant 0 : index
    %c0_61 = arith.constant 0 : index
    %84 = vector.load %arg5[%c0_60, %c0_61] : memref<1x128xf32, #tpu.memory_space<vmem>>, vector<1x128xf32>
    %85 = vector.broadcast %84 : vector<1x128xf32> to vector<256x128xf32>
    %86 = arith.addf %83, %85 : vector<256x128xf32>
    %cst_62 = arith.constant 0.000000e+00 : f32
    %87 = vector.broadcast %cst_62 : f32 to vector<256x128xf32>
    %88 = arith.maximumf %86, %87 : vector<256x128xf32>
    %89 = vector.shape_cast %88 : vector<256x128xf32> to vector<16x16x128xf32>
    %c0_63 = arith.constant 0 : index
    %c0_64 = arith.constant 0 : index
    %c0_65 = arith.constant 0 : index
    %c0_66 = arith.constant 0 : index
    %90 = vector.load %arg6[%c0_63, %c0_64, %c0_65, %c0_66] : memref<1x16x16x128xf32, #tpu.memory_space<vmem>>, vector<1x16x16x128xf32>
    %91 = vector.shape_cast %90 : vector<1x16x16x128xf32> to vector<16x16x128xf32>
    %92 = vector.shape_cast %89 : vector<16x16x128xf32> to vector<1x16x16x128xf32>
    tpu.vector_store %arg6[%c0_63, %c0_64, %c0_65, %c0_66], %92 {strides = array<i32>} : memref<1x16x16x128xf32, #tpu.memory_space<vmem>>, vector<1x16x16x128xf32>,
    return
  }
  func.func @transform_0(%arg0: i32, %arg1: i32, %arg2: i32) -> (i32, i32, i32, i32) {
    %c0_i32 = arith.constant 0 : i32
    %c0_i32_0 = arith.constant 0 : i32
    %c0_i32_1 = arith.constant 0 : i32
    %c0_i32_2 = arith.constant 0 : i32
    return %arg0, %c0_i32, %c0_i32_0, %c0_i32_1 : i32, i32, i32, i32
  }
  func.func @transform_1(%arg0: i32, %arg1: i32, %arg2: i32) -> (i32, i32, i32) {
    %c0_i32 = arith.constant 0 : i32
    %c0_i32_0 = arith.constant 0 : i32
    %c0_i32_1 = arith.constant 0 : i32
    return %c0_i32, %c0_i32_0, %arg1 : i32, i32, i32
  }
  func.func @transform_2(%arg0: i32, %arg1: i32, %arg2: i32) -> (i32, i32) {
    %c0_i32 = arith.constant 0 : i32
    %c0_i32_0 = arith.constant 0 : i32
    return %c0_i32, %arg1 : i32, i32
  }
  func.func @transform_3(%arg0: i32, %arg1: i32, %arg2: i32) -> (i32, i32, i32, i32) {
    %c0_i32 = arith.constant 0 : i32
    %c0_i32_0 = arith.constant 0 : i32
    return %arg0, %arg2, %c0_i32, %arg1 : i32, i32, i32, i32
  }
}

</mosaic_0001>

<llo_original>
// kernel: tpu_custom_call.1
$region0: #{tpu_custom_call.1}
  #allocation0 [shape = 'u32[]', space=smem, size = 0x4, offset = 0x4, fixed_abs, tag = 'smem constant byte address 0x4 - core index']
  #allocation1 [shape = 'u32[72,128]{1,0:T(1,128)}', space=vmem, size = 0x9000, scoped, tag = 'internal scratch']
  %s0 = inlined_call_operand.vmem [shape: f32[2,18,18,4], index: 0, kind: input, shape index: {}]
  %s1 = inlined_call_operand.vmem [shape: f32[9,4,128], index: 1, kind: input, shape index: {}]
  %s2 = inlined_call_operand.vmem [shape: f32[1,128], index: 2, kind: input, shape index: {}]
  %s3 = inlined_call_operand.hbm [shape: f32[2,16,16,128], index: 3, kind: output, shape index: {}]
  %s4 = sld [smem:[#allocation0]]
  $region45: #{tpu_custom_call.1} parent=0
    _
  %s6 = ssub.s32 1, %s4
  %s7 = scalar_select 0, %s6, %s4
  $region1: #{tpu_custom_call.1} parent=0
    #allocation2 [shape = 'u8[262144]{0}', space=vmem, size = 0x40000, scoped, tag = 'output window, operand 0']
    #allocation3 [shape = 's32[2]{0}', space=sflag, size = 0x8, scoped, tag = 'scoped memory for tpu_custom_call.1']
    %8 = vsyncpa [#allocation3], 0
    %s9 = scalar_lea.sflag [#allocation3], 1
    %10 = vsyncpa %s9, 0
    loop: start=0, step=1, limit=4
    $region2: #{tpu_custom_call.1} parent=1 // loop_pre_header
      _
    $region3: #{tpu_custom_call.1} parent=1 // loop_header
      %s12 = sphi 0, %s16
      %p13 = scmp.ge.s32.totalorder %s12, 4
      %s19 = sphi 0, %s38
      %s20 = sphi 0, %s34
      %s21 = sphi 0, %s30
      %s22 = sphi 0, %s19
      %s23 = sphi 0, %s20
      %s24 = sphi 0, %s21
      %s25 = sphi 0, %s22
      %s26 = sphi 0, %s23
      %s27 = sphi 0, %s24
      %s41 = sphi 0, %s43
      %s44 = sphi 0, %s41
      %s45 = sphi 0, %s44
      %s61 = sphi 0, %s45
      %s67 = sphi 0, %s69
      %s70 = sphi 0, %s67
      %s71 = sphi 0, %s70
      %s87 = sphi 0, %s71
      %s93 = sphi 0, %s95
      %s96 = sphi 0, %s93
      %s97 = sphi 0, %s96
      %s113 = sphi 0, %s97
      %s123 = sphi 0, %s125
      %s126 = sphi 0, %s123
      %s127 = sphi 0, %s126
      %s143 = sphi 0, %s127
    $region4: #{tpu_custom_call.1} parent=1 // loop_header_branch
      %15 = sbr.rel (%p13) target = $region8
    $region5: #{tpu_custom_call.1} parent=1 // loop_body
      %s17 = ssub.s32 %s12, 1
      %s18 = ssub.s32 %s12, 2
      %s28 = sadd.s32 1, %s21
      %p29 = scmp.ge.s32.totalorder %s28, 1
      %s30 = scalar_select %p29, 0, %s28
      %s31 = sadd.s32 1, %s20
      %s32 = scalar_select %p29, %s31, %s20
      %p33 = scmp.ge.s32.totalorder %s32, 1
      %s34 = scalar_select %p33, 0, %s32
      %s35 = sadd.s32 1, %s19
      %s36 = scalar_select %p33, %s35, %s19
      %p37 = scmp.ge.s32.totalorder %s36, 2
      %s38 = scalar_select %p37, 0, %s36
      %s39 = ssub.s32 %s19, %s38
      %p40 = scmp.eq.s32.totalorder %s39, 0
      %s42 = sadd.s32 %s41, 1
      %s43 = scalar_select %p40, %s41, %s42
      %p46 = pneg %p40
      %p47 = scmp.eq.s32.totalorder %s12, 1
      %p48 = por %p46, %p47
      %p49 = scmp.ne.s32.totalorder %s41, %s44
      %p50 = scmp.eq.s32.totalorder %s12, 0
      %p51 = por %p49, %p50
      %p52 = scmp.ne.s32.totalorder %s41, %s44
      %p53 = scmp.eq.s32.totalorder %s17, 1
      %p54 = por %p52, %p53
      %p55 = scmp.ne.s32.totalorder %s44, %s45
      %p56 = scmp.eq.s32.totalorder %s17, 0
      %p57 = por %p55, %p56
      %p58 = scmp.ne.s32.totalorder %s44, %s45
      %p59 = scmp.eq.s32.totalorder %s18, 1
      %p60 = por %p58, %p59
      %p62 = scmp.ne.s32.totalorder %s45, %s61
      %p63 = scmp.eq.s32.totalorder %s18, 0
      %p64 = por %p62, %p63
      %s65 = ssub.s32 %s20, %s34
      %p66 = scmp.eq.s32.totalorder %s65, 0
      %s68 = sadd.s32 %s67, 1
      %s69 = scalar_select %p66, %s67, %s68
      %p72 = pneg %p66
      %p73 = scmp.eq.s32.totalorder %s12, 1
      %p74 = por %p72, %p73
      %p75 = scmp.ne.s32.totalorder %s67, %s70
      %p76 = scmp.eq.s32.totalorder %s12, 0
      %p77 = por %p75, %p76
      %p78 = scmp.ne.s32.totalorder %s67, %s70
      %p79 = scmp.eq.s32.totalorder %s17, 1
      %p80 = por %p78, %p79
      %p81 = scmp.ne.s32.totalorder %s70, %s71
      %p82 = scmp.eq.s32.totalorder %s17, 0
      %p83 = por %p81, %p82
      %p84 = scmp.ne.s32.totalorder %s70, %s71
      %p85 = scmp.eq.s32.totalorder %s18, 1
      %p86 = por %p84, %p85
      %p88 = scmp.ne.s32.totalorder %s71, %s87
      %p89 = scmp.eq.s32.totalorder %s18, 0
      %p90 = por %p88, %p89
      %s91 = ssub.s32 %s20, %s34
      %p92 = scmp.eq.s32.totalorder %s91, 0
      %s94 = sadd.s32 %s93, 1
      %s95 = scalar_select %p92, %s93, %s94
      %p98 = pneg %p92
      %p99 = scmp.eq.s32.totalorder %s12, 1
      %p100 = por %p98, %p99
      %p101 = scmp.ne.s32.totalorder %s93, %s96
      %p102 = scmp.eq.s32.totalorder %s12, 0
      %p103 = por %p101, %p102
      %p104 = scmp.ne.s32.totalorder %s93, %s96
      %p105 = scmp.eq.s32.totalorder %s17, 1
      %p106 = por %p104, %p105
      %p107 = scmp.ne.s32.totalorder %s96, %s97
      %p108 = scmp.eq.s32.totalorder %s17, 0
      %p109 = por %p107, %p108
      %p110 = scmp.ne.s32.totalorder %s96, %s97
      %p111 = scmp.eq.s32.totalorder %s18, 1
      %p112 = por %p110, %p111
      %p114 = scmp.ne.s32.totalorder %s97, %s113
      %p115 = scmp.eq.s32.totalorder %s18, 0
      %p116 = por %p114, %p115
      %s117 = ssub.s32 %s19, %s38
      %s118 = ssub.s32 %s21, %s30
      %s119 = sor.u32 %s117, %s118
      %s120 = ssub.s32 %s20, %s34
      %s121 = sor.u32 %s119, %s120
      %p122 = scmp.eq.s32.totalorder %s121, 0
      %s124 = sadd.s32 %s123, 1
      %s125 = scalar_select %p122, %s123, %s124
      %p128 = pneg %p122
      %p129 = scmp.eq.s32.totalorder %s12, 1
      %p130 = por %p128, %p129
      %p131 = scmp.ne.s32.totalorder %s123, %s126
      %p132 = scmp.eq.s32.totalorder %s12, 0
      %p133 = por %p131, %p132
      %p134 = scmp.ne.s32.totalorder %s123, %s126
      %p135 = scmp.eq.s32.totalorder %s17, 1
      %p136 = por %p134, %p135
      %p137 = scmp.ne.s32.totalorder %s126, %s127
      %p138 = scmp.eq.s32.totalorder %s17, 0
      %p139 = por %p137, %p138
      %p140 = scmp.ne.s32.totalorder %s126, %s127
      %p141 = scmp.eq.s32.totalorder %s18, 1
      %p142 = por %p140, %p141
      %p144 = scmp.ne.s32.totalorder %s127, %s143
      %p145 = scmp.eq.s32.totalorder %s18, 0
      %p146 = por %p144, %p145
      %p147 = scmp.le.s32.totalorder 1, %s12
      %p148 = scmp.lt.s32.totalorder %s12, 3
      %p149 = pnand %p147, %p148
      %p150 = pneg %p149
      // Predicated region
      $region9: #{tpu_custom_call.1} parent=5 // pred_check
        _
      $region10: #{tpu_custom_call.1} parent=5 // pred_check_branch
        %152 = sbr.rel (%p149) target = $region12
      $region11: #{tpu_custom_call.1} parent=5 // pred_region
        %s153 = ssub.s32 %s12, 1
        // Predicated region
        $region13: #{tpu_custom_call.1} parent=11 // pred_check
          %p154 = pneg %p83
        $region14: #{tpu_custom_call.1} parent=11 // pred_check_branch
          %156 = sbr.rel (%p154) target = $region16
        $region15: #{tpu_custom_call.1} parent=11 // pred_region
          %p157 = scmp.lt.s32.totalorder %s23, 0
          %s158 = scalar_select %p157, %s23, 0
          %s159 = smul.addr %s158, 4
          %s160 = scalar_lea.vmem %s1, %s159
        $region16: #{tpu_custom_call.1} parent=11 // pred_fallthru
          _
        // Predicated region
        $region17: #{tpu_custom_call.1} parent=11 // pred_check
          %p161 = pneg %p109
        $region18: #{tpu_custom_call.1} parent=11 // pred_check_branch
          %163 = sbr.rel (%p161) target = $region20
        $region19: #{tpu_custom_call.1} parent=11 // pred_region
          %p164 = scmp.lt.s32.totalorder %s23, 0
          %s165 = scalar_select %p164, %s23, 0
          %s166 = scalar_lea.vmem %s2, %s165
        $region20: #{tpu_custom_call.1} parent=11 // pred_fallthru
          _
      $region12: #{tpu_custom_call.1} parent=5 // pred_fallthru
        _
      %p167 = scmp.lt.s32.totalorder %s12, 2
      // Predicated region
      $region21: #{tpu_custom_call.1} parent=5 // pred_check
        %p168 = pneg %p167
      $region22: #{tpu_custom_call.1} parent=5 // pred_check_branch
        %170 = sbr.rel (%p168) target = $region24
      $region23: #{tpu_custom_call.1} parent=5 // pred_region
        // Predicated region
        $region25: #{tpu_custom_call.1} parent=23 // pred_check
          %p171 = pneg %p51
        $region26: #{tpu_custom_call.1} parent=23 // pred_check_branch
          %173 = sbr.rel (%p171) target = $region28
        $region27: #{tpu_custom_call.1} parent=23 // pred_region
          %p174 = scmp.lt.s32.totalorder %s19, 1
          %s175 = scalar_select %p174, %s19, 1
          %s176 = smul.addr %s175, 54
          %s177 = smul.addr %s176, 8
          %s178 = scalar_lea.vmem %s0, %s177
        $region28: #{tpu_custom_call.1} parent=23 // pred_fallthru
          _
      $region24: #{tpu_custom_call.1} parent=5 // pred_fallthru
        _
      %p179 = scmp.le.s32.totalorder 1, %s12
      %p180 = scmp.lt.s32.totalorder %s12, 3
      %p181 = pnand %p179, %p180
      %p182 = pneg %p181
      // Predicated region
      $region29: #{tpu_custom_call.1} parent=5 // pred_check
        _
      $region30: #{tpu_custom_call.1} parent=5 // pred_check_branch
        %184 = sbr.rel (%p181) target = $region32
      $region31: #{tpu_custom_call.1} parent=5 // pred_region
        %s185 = ssub.s32 %s12, 1
        %p186 = scmp.lt.s32.totalorder %s22, 1
        %s187 = scalar_select %p186, %s22, 1
        %s188 = smul.addr %s187, 54
        %s189 = smul.addr %s188, 8
        %s190 = scalar_lea.vmem %s0, %s189
        %p191 = pneg %p57
        %p192 = pneg %p54
        %p193 = scmp.lt.s32.totalorder %s23, 0
        %s194 = scalar_select %p193, %s23, 0
        %s195 = smul.addr %s194, 4
        %s196 = scalar_lea.vmem %s1, %s195
        %p197 = pneg %p83
        %p198 = pneg %p80
        %p199 = scmp.lt.s32.totalorder %s23, 0
        %s200 = scalar_select %p199, %s23, 0
        %s201 = scalar_lea.vmem %s2, %s200
        %p202 = pneg %p109
        %p203 = pneg %p106
        %p204 = pneg %p139
        %p205 = pneg %p136
        %s206 = sand.u32 %s126, 1
        %s207 = scalar_lea.sflag [#allocation3], %s206
        %s208 = sand.u32 %s126, 1
        %s209 = smul.addr %s208, 256
        %s210 = scalar_lea.vmem [#allocation2], %s209
        %p211 = scmp.lt.s32.totalorder %s22, 1
        %s212 = scalar_select %p211, %s22, 1
        %s213 = smul.addr %s212, 54
        %s214 = smul.addr %s213, 8
        %s215 = scalar_lea.vmem %s0, %s214
        %p216 = scmp.lt.s32.totalorder %s23, 0
        %s217 = scalar_select %p216, %s23, 0
        %s218 = smul.addr %s217, 4
        %s219 = scalar_lea.vmem %s1, %s218
        %p220 = scmp.lt.s32.totalorder %s23, 0
        %s221 = scalar_select %p220, %s23, 0
        %s222 = scalar_lea.vmem %s2, %s221
        %s223 = smul.u32 16, %s24
        %s224 = smul.u32 %s24, 16
        %s225 = smul.u32 %s224, 24
        %s226 = scalar_lea.vmem %s215, %s225
        %v227 = vld [vmem:[%s226] sm:$0xff]
        %v228 = vld [vmem:[%s226 + $0x8] sm:$0xff]
        %v229 = vld [vmem:[%s226 + $0x18] sm:$0xff]
        %v230 = vld [vmem:[%s226 + $0x20] sm:$0xff]
        %v231 = vld [vmem:[%s226 + $0x30] sm:$0xff]
        %v232 = vld [vmem:[%s226 + $0x38] sm:$0xff]
        %v233 = vld [vmem:[%s226 + $0x48] sm:$0xff]
        %v234 = vld [vmem:[%s226 + $0x50] sm:$0xff]
        %v235 = vld [vmem:[%s226 + $0x60] sm:$0xff]
        %v236 = vld [vmem:[%s226 + $0x68] sm:$0xff]
        %v237 = vld [vmem:[%s226 + $0x78] sm:$0xff]
        %v238 = vld [vmem:[%s226 + $0x80] sm:$0xff]
        %v239 = vld [vmem:[%s226 + $0x90] sm:$0xff]
        %v240 = vld [vmem:[%s226 + $0x98] sm:$0xff]
        %v241 = vld [vmem:[%s226 + $0xa8] sm:$0xff]
        %v242 = vld [vmem:[%s226 + $0xb0] sm:$0xff]
        %v243 = vld [vmem:[%s226 + $0xc0] sm:$0xff]
        %v244 = vld [vmem:[%s226 + $0xc8] sm:$0xff]
        %v245 = vld [vmem:[%s226 + $0xd8] sm:$0xff]
        %v246 = vld [vmem:[%s226 + $0xe0] sm:$0xff]
        %v247 = vld [vmem:[%s226 + $0xf0] sm:$0xff]
        %v248 = vld [vmem:[%s226 + $0xf8] sm:$0xff]
        %v249 = vld [vmem:[%s226 + $0x108] sm:$0xff]
        %v250 = vld [vmem:[%s226 + $0x110] sm:$0xff]
        %v251 = vld [vmem:[%s226 + $0x120] sm:$0xff]
        %v252 = vld [vmem:[%s226 + $0x128] sm:$0xff]
        %v253 = vld [vmem:[%s226 + $0x138] sm:$0xff]
        %v254 = vld [vmem:[%s226 + $0x140] sm:$0xff]
        %v255 = vld [vmem:[%s226 + $0x150] sm:$0xff]
        %v256 = vld [vmem:[%s226 + $0x158] sm:$0xff]
        %v257 = vld [vmem:[%s226 + $0x168] sm:$0xff]
        %v258 = vld [vmem:[%s226 + $0x170] sm:$0xff]
        %v259 = vld [vmem:[%s219] sm:$0xf]
        %v260 = vld [vmem:[%s226 + $0x1] sm:$0xff]
        %v261 = vld [vmem:[%s226 + $0x9] sm:$0xff]
        %v262 = vld [vmem:[%s226 + $0x19] sm:$0xff]
        %v263 = vld [vmem:[%s226 + $0x21] sm:$0xff]
        %v264 = vld [vmem:[%s226 + $0x31] sm:$0xff]
        %v265 = vld [vmem:[%s226 + $0x39] sm:$0xff]
        %v266 = vld [vmem:[%s226 + $0x49] sm:$0xff]
        %v267 = vld [vmem:[%s226 + $0x51] sm:$0xff]
        %v268 = vld [vmem:[%s226 + $0x61] sm:$0xff]
        %v269 = vld [vmem:[%s226 + $0x69] sm:$0xff]
        %v270 = vld [vmem:[%s226 + $0x79] sm:$0xff]
        %v271 = vld [vmem:[%s226 + $0x81] sm:$0xff]
        %v272 = vld [vmem:[%s226 + $0x91] sm:$0xff]
        %v273 = vld [vmem:[%s226 + $0x99] sm:$0xff]
        %v274 = vld [vmem:[%s226 + $0xa9] sm:$0xff]
        %v275 = vld [vmem:[%s226 + $0xb1] sm:$0xff]
        %v276 = vld [vmem:[%s226 + $0xc1] sm:$0xff]
        %v277 = vld [vmem:[%s226 + $0xc9] sm:$0xff]
        %v278 = vld [vmem:[%s226 + $0xd9] sm:$0xff]
        %v279 = vld [vmem:[%s226 + $0xe1] sm:$0xff]
        %v280 = vld [vmem:[%s226 + $0xf1] sm:$0xff]
        %v281 = vld [vmem:[%s226 + $0xf9] sm:$0xff]
        %v282 = vld [vmem:[%s226 + $0x109] sm:$0xff]
        %v283 = vld [vmem:[%s226 + $0x111] sm:$0xff]
        %v284 = vld [vmem:[%s226 + $0x121] sm:$0xff]
        %v285 = vld [vmem:[%s226 + $0x129] sm:$0xff]
        %v286 = vld [vmem:[%s226 + $0x139] sm:$0xff]
        %v287 = vld [vmem:[%s226 + $0x141] sm:$0xff]
        %v288 = vld [vmem:[%s226 + $0x151] sm:$0xff]
        %v289 = vld [vmem:[%s226 + $0x159] sm:$0xff]
        %v290 = vld [vmem:[%s226 + $0x169] sm:$0xff]
        %v291 = vld [vmem:[%s226 + $0x171] sm:$0xff]
        %s292 = scalar_lea.vmem %s219, 4
        %v293 = vld [vmem:[%s292] sm:$0xf]
        %vm294 = vcmask 31744
        %v296 = vsel %vm294, %v260, 0
        %v299 = vsel %vm294, %v261, 0
        %v302 = vsel %vm294, %v262, 0
        %v305 = vsel %vm294, %v263, 0
        %v308 = vsel %vm294, %v264, 0
        %v311 = vsel %vm294, %v265, 0
        %v314 = vsel %vm294, %v266, 0
        %v317 = vsel %vm294, %v267, 0
        %v320 = vsel %vm294, %v268, 0
        %v323 = vsel %vm294, %v269, 0
        %v326 = vsel %vm294, %v270, 0
        %v329 = vsel %vm294, %v271, 0
        %v332 = vsel %vm294, %v272, 0
        %v335 = vsel %vm294, %v273, 0
        %v338 = vsel %vm294, %v274, 0
        %v341 = vsel %vm294, %v275, 0
        %v344 = vsel %vm294, %v276, 0
        %v347 = vsel %vm294, %v277, 0
        %v350 = vsel %vm294, %v278, 0
        %v353 = vsel %vm294, %v279, 0
        %v356 = vsel %vm294, %v280, 0
        %v359 = vsel %vm294, %v281, 0
        %v362 = vsel %vm294, %v282, 0
        %v365 = vsel %vm294, %v283, 0
        %v368 = vsel %vm294, %v284, 0
        %v371 = vsel %vm294, %v285, 0
        %v374 = vsel %vm294, %v286, 0
        %v377 = vsel %vm294, %v287, 0
        %v380 = vsel %vm294, %v288, 0
        %v383 = vsel %vm294, %v289, 0
        %v386 = vsel %vm294, %v290, 0
        %v389 = vsel %vm294, %v291, 0
        %vm391 = vcmask 1043456
        %v393 = vsel %vm391, %v293, 0
        %395 = vmatpush.msra.mxu0 0.0
        %396 = vmatpush.msra.mxu0 0.0
        %397 = vmatpush.msra.mxu0 0.0
        %398 = vmatpush.msra.mxu0 0.0
        %399 = vmatpush.msra.mxu0 0.0
        %400 = vmatpush.msra.mxu0 0.0
        %401 = vmatpush.msra.mxu0 0.0
        %402 = vmatpush.msra.mxu0 0.0
        %403 = vmatpush.msra.mxu0 0.0
        %404 = vmatpush.msra.mxu0 0.0
        %405 = vmatpush.msra.mxu0 0.0
        %406 = vmatpush.msra.mxu0 0.0
        %407 = vmatpush.msra.mxu0 0.0
        %408 = vmatpush.msra.mxu0 0.0
        %409 = vmatpush.msra.mxu0 0.0
        %410 = vmatpush.msra.mxu0 %v393
        %411 = vmatmul.f32.gmra.mxu0 %v296
        %v412 = vpop.f32.mrf.mxu0
        %v413 = vadd.f32 0.0, %v412
        %414 = vmatmul.f32.gmra.mxu0 %v299
        %v415 = vpop.f32.mrf.mxu0
        %v416 = vadd.f32 0.0, %v415
        %417 = vmatmul.f32.gmra.mxu0 %v302
        %v418 = vpop.f32.mrf.mxu0
        %v419 = vadd.f32 0.0, %v418
        %420 = vmatmul.f32.gmra.mxu0 %v305
        %v421 = vpop.f32.mrf.mxu0
        %v422 = vadd.f32 0.0, %v421
        %423 = vmatmul.f32.gmra.mxu0 %v308
        %v424 = vpop.f32.mrf.mxu0
        %v425 = vadd.f32 0.0, %v424
        %426 = vmatmul.f32.gmra.mxu0 %v311
        %v427 = vpop.f32.mrf.mxu0
        %v428 = vadd.f32 0.0, %v427
        %429 = vmatmul.f32.gmra.mxu0 %v314
        %v430 = vpop.f32.mrf.mxu0
        %v431 = vadd.f32 0.0, %v430
        %432 = vmatmul.f32.gmra.mxu0 %v317
        %v433 = vpop.f32.mrf.mxu0
        %v434 = vadd.f32 0.0, %v433
        %435 = vmatmul.f32.gmra.mxu0 %v320
        %v436 = vpop.f32.mrf.mxu0
        %v437 = vadd.f32 0.0, %v436
        %438 = vmatmul.f32.gmra.mxu0 %v323
        %v439 = vpop.f32.mrf.mxu0
        %v440 = vadd.f32 0.0, %v439
        %441 = vmatmul.f32.gmra.mxu0 %v326
        %v442 = vpop.f32.mrf.mxu0
        %v443 = vadd.f32 0.0, %v442
        %444 = vmatmul.f32.gmra.mxu0 %v329
        %v445 = vpop.f32.mrf.mxu0
        %v446 = vadd.f32 0.0, %v445
        %447 = vmatmul.f32.gmra.mxu0 %v332
        %v448 = vpop.f32.mrf.mxu0
        %v449 = vadd.f32 0.0, %v448
        %450 = vmatmul.f32.gmra.mxu0 %v335
        %v451 = vpop.f32.mrf.mxu0
        %v452 = vadd.f32 0.0, %v451
        %453 = vmatmul.f32.gmra.mxu0 %v338
        %v454 = vpop.f32.mrf.mxu0
        %v455 = vadd.f32 0.0, %v454
        %456 = vmatmul.f32.gmra.mxu0 %v341
        %v457 = vpop.f32.mrf.mxu0
        %v458 = vadd.f32 0.0, %v457
        %459 = vmatmul.f32.gmra.mxu0 %v344
        %v460 = vpop.f32.mrf.mxu0
        %v461 = vadd.f32 0.0, %v460
        %462 = vmatmul.f32.gmra.mxu0 %v347
        %v463 = vpop.f32.mrf.mxu0
        %v464 = vadd.f32 0.0, %v463
        %465 = vmatmul.f32.gmra.mxu0 %v350
        %v466 = vpop.f32.mrf.mxu0
        %v467 = vadd.f32 0.0, %v466
        %468 = vmatmul.f32.gmra.mxu0 %v353
        %v469 = vpop.f32.mrf.mxu0
        %v470 = vadd.f32 0.0, %v469
        %471 = vmatmul.f32.gmra.mxu0 %v356
        %v472 = vpop.f32.mrf.mxu0
        %v473 = vadd.f32 0.0, %v472
        %474 = vmatmul.f32.gmra.mxu0 %v359
        %v475 = vpop.f32.mrf.mxu0
        %v476 = vadd.f32 0.0, %v475
        %477 = vmatmul.f32.gmra.mxu0 %v362
        %v478 = vpop.f32.mrf.mxu0
        %v479 = vadd.f32 0.0, %v478
        %480 = vmatmul.f32.gmra.mxu0 %v365
        %v481 = vpop.f32.mrf.mxu0
        %v482 = vadd.f32 0.0, %v481
        %483 = vmatmul.f32.gmra.mxu0 %v368
        %v484 = vpop.f32.mrf.mxu0
        %v485 = vadd.f32 0.0, %v484
        %486 = vmatmul.f32.gmra.mxu0 %v371
        %v487 = vpop.f32.mrf.mxu0
        %v488 = vadd.f32 0.0, %v487
        %489 = vmatmul.f32.gmra.mxu0 %v374
        %v490 = vpop.f32.mrf.mxu0
        %v491 = vadd.f32 0.0, %v490
        %492 = vmatmul.f32.gmra.mxu0 %v377
        %v493 = vpop.f32.mrf.mxu0
        %v494 = vadd.f32 0.0, %v493
        %495 = vmatmul.f32.gmra.mxu0 %v380
        %v496 = vpop.f32.mrf.mxu0
        %v497 = vadd.f32 0.0, %v496
        %498 = vmatmul.f32.gmra.mxu0 %v383
        %v499 = vpop.f32.mrf.mxu0
        %v500 = vadd.f32 0.0, %v499
        %501 = vmatmul.f32.gmra.mxu0 %v386
        %v502 = vpop.f32.mrf.mxu0
        %v503 = vadd.f32 0.0, %v502
        %504 = vmatmul.f32.gmra.mxu0 %v389
        %v505 = vpop.f32.mrf.mxu0
        %v506 = vadd.f32 0.0, %v505
        %507 = vdwg.mxu0
        %v509 = vsel %vm294, %v227, 0
        %v512 = vsel %vm294, %v228, 0
        %v515 = vsel %vm294, %v229, 0
        %v518 = vsel %vm294, %v230, 0
        %v521 = vsel %vm294, %v231, 0
        %v524 = vsel %vm294, %v232, 0
        %v527 = vsel %vm294, %v233, 0
        %v530 = vsel %vm294, %v234, 0
        %v533 = vsel %vm294, %v235, 0
        %v536 = vsel %vm294, %v236, 0
        %v539 = vsel %vm294, %v237, 0
        %v542 = vsel %vm294, %v238, 0
        %v545 = vsel %vm294, %v239, 0
        %v548 = vsel %vm294, %v240, 0
        %v551 = vsel %vm294, %v241, 0
        %v554 = vsel %vm294, %v242, 0
        %v557 = vsel %vm294, %v243, 0
        %v560 = vsel %vm294, %v244, 0
        %v563 = vsel %vm294, %v245, 0
        %v566 = vsel %vm294, %v246, 0
        %v569 = vsel %vm294, %v247, 0
        %v572 = vsel %vm294, %v248, 0
        %v575 = vsel %vm294, %v249, 0
        %v578 = vsel %vm294, %v250, 0
        %v581 = vsel %vm294, %v251, 0
        %v584 = vsel %vm294, %v252, 0
        %v587 = vsel %vm294, %v253, 0
        %v590 = vsel %vm294, %v254, 0
        %v593 = vsel %vm294, %v255, 0
        %v596 = vsel %vm294, %v256, 0
        %v599 = vsel %vm294, %v257, 0
        %v602 = vsel %vm294, %v258, 0
        %v605 = vsel %vm391, %v259, 0
        %607 = vmatpush.msra.mxu0 0.0
        %608 = vmatpush.msra.mxu0 0.0
        %609 = vmatpush.msra.mxu0 0.0
        %610 = vmatpush.msra.mxu0 0.0
        %611 = vmatpush.msra.mxu0 0.0
        %612 = vmatpush.msra.mxu0 0.0
        %613 = vmatpush.msra.mxu0 0.0
        %614 = vmatpush.msra.mxu0 0.0
        %615 = vmatpush.msra.mxu0 0.0
        %616 = vmatpush.msra.mxu0 0.0
        %617 = vmatpush.msra.mxu0 0.0
        %618 = vmatpush.msra.mxu0 0.0
        %619 = vmatpush.msra.mxu0 0.0
        %620 = vmatpush.msra.mxu0 0.0
        %621 = vmatpush.msra.mxu0 0.0
        %622 = vmatpush.msra.mxu0 %v605
        %623 = vmatmul.f32.gmra.mxu0 %v509
        %v624 = vpop.f32.mrf.mxu0
        %v625 = vadd.f32 %v413, %v624
        %626 = vmatmul.f32.gmra.mxu0 %v512
        %v627 = vpop.f32.mrf.mxu0
        %v628 = vadd.f32 %v416, %v627
        %629 = vmatmul.f32.gmra.mxu0 %v515
        %v630 = vpop.f32.mrf.mxu0
        %v631 = vadd.f32 %v419, %v630
        %632 = vmatmul.f32.gmra.mxu0 %v518
        %v633 = vpop.f32.mrf.mxu0
        %v634 = vadd.f32 %v422, %v633
        %635 = vmatmul.f32.gmra.mxu0 %v521
        %v636 = vpop.f32.mrf.mxu0
        %v637 = vadd.f32 %v425, %v636
        %638 = vmatmul.f32.gmra.mxu0 %v524
        %v639 = vpop.f32.mrf.mxu0
        %v640 = vadd.f32 %v428, %v639
        %641 = vmatmul.f32.gmra.mxu0 %v527
        %v642 = vpop.f32.mrf.mxu0
        %v643 = vadd.f32 %v431, %v642
        %644 = vmatmul.f32.gmra.mxu0 %v530
        %v645 = vpop.f32.mrf.mxu0
        %v646 = vadd.f32 %v434, %v645
        %647 = vmatmul.f32.gmra.mxu0 %v533
        %v648 = vpop.f32.mrf.mxu0
        %v649 = vadd.f32 %v437, %v648
        %650 = vmatmul.f32.gmra.mxu0 %v536
        %v651 = vpop.f32.mrf.mxu0
        %v652 = vadd.f32 %v440, %v651
        %653 = vmatmul.f32.gmra.mxu0 %v539
        %v654 = vpop.f32.mrf.mxu0
        %v655 = vadd.f32 %v443, %v654
        %656 = vmatmul.f32.gmra.mxu0 %v542
        %v657 = vpop.f32.mrf.mxu0
        %v658 = vadd.f32 %v446, %v657
        %659 = vmatmul.f32.gmra.mxu0 %v545
        %v660 = vpop.f32.mrf.mxu0
        %v661 = vadd.f32 %v449, %v660
        %662 = vmatmul.f32.gmra.mxu0 %v548
        %v663 = vpop.f32.mrf.mxu0
        %v664 = vadd.f32 %v452, %v663
        %665 = vmatmul.f32.gmra.mxu0 %v551
        %v666 = vpop.f32.mrf.mxu0
        %v667 = vadd.f32 %v455, %v666
        %668 = vmatmul.f32.gmra.mxu0 %v554
        %v669 = vpop.f32.mrf.mxu0
        %v670 = vadd.f32 %v458, %v669
        %671 = vmatmul.f32.gmra.mxu0 %v557
        %v672 = vpop.f32.mrf.mxu0
        %v673 = vadd.f32 %v461, %v672
        %674 = vmatmul.f32.gmra.mxu0 %v560
        %v675 = vpop.f32.mrf.mxu0
        %v676 = vadd.f32 %v464, %v675
        %677 = vmatmul.f32.gmra.mxu0 %v563
        %v678 = vpop.f32.mrf.mxu0
        %v679 = vadd.f32 %v467, %v678
        %680 = vmatmul.f32.gmra.mxu0 %v566
        %v681 = vpop.f32.mrf.mxu0
        %v682 = vadd.f32 %v470, %v681
        %683 = vmatmul.f32.gmra.mxu0 %v569
        %v684 = vpop.f32.mrf.mxu0
        %v685 = vadd.f32 %v473, %v684
        %686 = vmatmul.f32.gmra.mxu0 %v572
        %v687 = vpop.f32.mrf.mxu0
        %v688 = vadd.f32 %v476, %v687
        %689 = vmatmul.f32.gmra.mxu0 %v575
        %v690 = vpop.f32.mrf.mxu0
        %v691 = vadd.f32 %v479, %v690
        %692 = vmatmul.f32.gmra.mxu0 %v578
        %v693 = vpop.f32.mrf.mxu0
        %v694 = vadd.f32 %v482, %v693
        %695 = vmatmul.f32.gmra.mxu0 %v581
        %v696 = vpop.f32.mrf.mxu0
        %v697 = vadd.f32 %v485, %v696
        %698 = vmatmul.f32.gmra.mxu0 %v584
        %v699 = vpop.f32.mrf.mxu0
        %v700 = vadd.f32 %v488, %v699
        %701 = vmatmul.f32.gmra.mxu0 %v587
        %v702 = vpop.f32.mrf.mxu0
        %v703 = vadd.f32 %v491, %v702
        %704 = vmatmul.f32.gmra.mxu0 %v590
        %v705 = vpop.f32.mrf.mxu0
        %v706 = vadd.f32 %v494, %v705
        %707 = vmatmul.f32.gmra.mxu0 %v593
        %v708 = vpop.f32.mrf.mxu0
        %v709 = vadd.f32 %v497, %v708
        %710 = vmatmul.f32.gmra.mxu0 %v596
        %v711 = vpop.f32.mrf.mxu0
        %v712 = vadd.f32 %v500, %v711
        %713 = vmatmul.f32.gmra.mxu0 %v599
        %v714 = vpop.f32.mrf.mxu0
        %v715 = vadd.f32 %v503, %v714
        %716 = vmatmul.f32.gmra.mxu0 %v602
        %v717 = vpop.f32.mrf.mxu0
        %v718 = vadd.f32 %v506, %v717
        %719 = vdwg.mxu0
        %v720 = vld [vmem:[%s226 + $0x2] sm:$0xff]
        %v721 = vld [vmem:[%s226 + $0xa] sm:$0xff]
        %v722 = vld [vmem:[%s226 + $0x1a] sm:$0xff]
        %v723 = vld [vmem:[%s226 + $0x22] sm:$0xff]
        %v724 = vld [vmem:[%s226 + $0x32] sm:$0xff]
        %v725 = vld [vmem:[%s226 + $0x3a] sm:$0xff]
        %v726 = vld [vmem:[%s226 + $0x4a] sm:$0xff]
        %v727 = vld [vmem:[%s226 + $0x52] sm:$0xff]
        %v728 = vld [vmem:[%s226 + $0x62] sm:$0xff]
        %v729 = vld [vmem:[%s226 + $0x6a] sm:$0xff]
        %v730 = vld [vmem:[%s226 + $0x7a] sm:$0xff]
        %v731 = vld [vmem:[%s226 + $0x82] sm:$0xff]
        %v732 = vld [vmem:[%s226 + $0x92] sm:$0xff]
        %v733 = vld [vmem:[%s226 + $0x9a] sm:$0xff]
        %v734 = vld [vmem:[%s226 + $0xaa] sm:$0xff]
        %v735 = vld [vmem:[%s226 + $0xb2] sm:$0xff]
        %v736 = vld [vmem:[%s226 + $0xc2] sm:$0xff]
        %v737 = vld [vmem:[%s226 + $0xca] sm:$0xff]
        %v738 = vld [vmem:[%s226 + $0xda] sm:$0xff]
        %v739 = vld [vmem:[%s226 + $0xe2] sm:$0xff]
        %v740 = vld [vmem:[%s226 + $0xf2] sm:$0xff]
        %v741 = vld [vmem:[%s226 + $0xfa] sm:$0xff]
        %v742 = vld [vmem:[%s226 + $0x10a] sm:$0xff]
        %v743 = vld [vmem:[%s226 + $0x112] sm:$0xff]
        %v744 = vld [vmem:[%s226 + $0x122] sm:$0xff]
        %v745 = vld [vmem:[%s226 + $0x12a] sm:$0xff]
        %v746 = vld [vmem:[%s226 + $0x13a] sm:$0xff]
        %v747 = vld [vmem:[%s226 + $0x142] sm:$0xff]
        %v748 = vld [vmem:[%s226 + $0x152] sm:$0xff]
        %v749 = vld [vmem:[%s226 + $0x15a] sm:$0xff]
        %v750 = vld [vmem:[%s226 + $0x16a] sm:$0xff]
        %v751 = vld [vmem:[%s226 + $0x172] sm:$0xff]
        %s752 = scalar_lea.vmem %s219, 8
        %v753 = vld [vmem:[%s752] sm:$0xf]
        %v755 = vsel %vm294, %v720, 0
        %v758 = vsel %vm294, %v721, 0
        %v761 = vsel %vm294, %v722, 0
        %v764 = vsel %vm294, %v723, 0
        %v767 = vsel %vm294, %v724, 0
        %v770 = vsel %vm294, %v725, 0
        %v773 = vsel %vm294, %v726, 0
        %v776 = vsel %vm294, %v727, 0
        %v779 = vsel %vm294, %v728, 0
        %v782 = vsel %vm294, %v729, 0
        %v785 = vsel %vm294, %v730, 0
        %v788 = vsel %vm294, %v731, 0
        %v791 = vsel %vm294, %v732, 0
        %v794 = vsel %vm294, %v733, 0
        %v797 = vsel %vm294, %v734, 0
        %v800 = vsel %vm294, %v735, 0
        %v803 = vsel %vm294, %v736, 0
        %v806 = vsel %vm294, %v737, 0
        %v809 = vsel %vm294, %v738, 0
        %v812 = vsel %vm294, %v739, 0
        %v815 = vsel %vm294, %v740, 0
        %v818 = vsel %vm294, %v741, 0
        %v821 = vsel %vm294, %v742, 0
        %v824 = vsel %vm294, %v743, 0
        %v827 = vsel %vm294, %v744, 0
        %v830 = vsel %vm294, %v745, 0
        %v833 = vsel %vm294, %v746, 0
        %v836 = vsel %vm294, %v747, 0
        %v839 = vsel %vm294, %v748, 0
        %v842 = vsel %vm294, %v749, 0
        %v845 = vsel %vm294, %v750, 0
        %v848 = vsel %vm294, %v751, 0
        %v851 = vsel %vm391, %v753, 0
        %853 = vmatpush.msra.mxu0 0.0
        %854 = vmatpush.msra.mxu0 0.0
        %855 = vmatpush.msra.mxu0 0.0
        %856 = vmatpush.msra.mxu0 0.0
        %857 = vmatpush.msra.mxu0 0.0
        %858 = vmatpush.msra.mxu0 0.0
        %859 = vmatpush.msra.mxu0 0.0
        %860 = vmatpush.msra.mxu0 0.0
        %861 = vmatpush.msra.mxu0 0.0
        %862 = vmatpush.msra.mxu0 0.0
        %863 = vmatpush.msra.mxu0 0.0
        %864 = vmatpush.msra.mxu0 0.0
        %865 = vmatpush.msra.mxu0 0.0
        %866 = vmatpush.msra.mxu0 0.0
        %867 = vmatpush.msra.mxu0 0.0
        %868 = vmatpush.msra.mxu0 %v851
        %869 = vmatmul.f32.gmra.mxu0 %v755
        %v870 = vpop.f32.mrf.mxu0
        %v871 = vadd.f32 0.0, %v870
        %872 = vmatmul.f32.gmra.mxu0 %v758
        %v873 = vpop.f32.mrf.mxu0
        %v874 = vadd.f32 0.0, %v873
        %875 = vmatmul.f32.gmra.mxu0 %v761
        %v876 = vpop.f32.mrf.mxu0
        %v877 = vadd.f32 0.0, %v876
        %878 = vmatmul.f32.gmra.mxu0 %v764
        %v879 = vpop.f32.mrf.mxu0
        %v880 = vadd.f32 0.0, %v879
        %881 = vmatmul.f32.gmra.mxu0 %v767
        %v882 = vpop.f32.mrf.mxu0
        %v883 = vadd.f32 0.0, %v882
        %884 = vmatmul.f32.gmra.mxu0 %v770
        %v885 = vpop.f32.mrf.mxu0
        %v886 = vadd.f32 0.0, %v885
        %887 = vmatmul.f32.gmra.mxu0 %v773
        %v888 = vpop.f32.mrf.mxu0
        %v889 = vadd.f32 0.0, %v888
        %890 = vmatmul.f32.gmra.mxu0 %v776
        %v891 = vpop.f32.mrf.mxu0
        %v892 = vadd.f32 0.0, %v891
        %893 = vmatmul.f32.gmra.mxu0 %v779
        %v894 = vpop.f32.mrf.mxu0
        %v895 = vadd.f32 0.0, %v894
        %896 = vmatmul.f32.gmra.mxu0 %v782
        %v897 = vpop.f32.mrf.mxu0
        %v898 = vadd.f32 0.0, %v897
        %899 = vmatmul.f32.gmra.mxu0 %v785
        %v900 = vpop.f32.mrf.mxu0
        %v901 = vadd.f32 0.0, %v900
        %902 = vmatmul.f32.gmra.mxu0 %v788
        %v903 = vpop.f32.mrf.mxu0
        %v904 = vadd.f32 0.0, %v903
        %905 = vmatmul.f32.gmra.mxu0 %v791
        %v906 = vpop.f32.mrf.mxu0
        %v907 = vadd.f32 0.0, %v906
        %908 = vmatmul.f32.gmra.mxu0 %v794
        %v909 = vpop.f32.mrf.mxu0
        %v910 = vadd.f32 0.0, %v909
        %911 = vmatmul.f32.gmra.mxu0 %v797
        %v912 = vpop.f32.mrf.mxu0
        %v913 = vadd.f32 0.0, %v912
        %914 = vmatmul.f32.gmra.mxu0 %v800
        %v915 = vpop.f32.mrf.mxu0
        %v916 = vadd.f32 0.0, %v915
        %917 = vmatmul.f32.gmra.mxu0 %v803
        %v918 = vpop.f32.mrf.mxu0
        %v919 = vadd.f32 0.0, %v918
        %920 = vmatmul.f32.gmra.mxu0 %v806
        %v921 = vpop.f32.mrf.mxu0
        %v922 = vadd.f32 0.0, %v921
        %923 = vmatmul.f32.gmra.mxu0 %v809
        %v924 = vpop.f32.mrf.mxu0
        %v925 = vadd.f32 0.0, %v924
        %926 = vmatmul.f32.gmra.mxu0 %v812
        %v927 = vpop.f32.mrf.mxu0
        %v928 = vadd.f32 0.0, %v927
        %929 = vmatmul.f32.gmra.mxu0 %v815
        %v930 = vpop.f32.mrf.mxu0
        %v931 = vadd.f32 0.0, %v930
        %932 = vmatmul.f32.gmra.mxu0 %v818
        %v933 = vpop.f32.mrf.mxu0
        %v934 = vadd.f32 0.0, %v933
        %935 = vmatmul.f32.gmra.mxu0 %v821
        %v936 = vpop.f32.mrf.mxu0
        %v937 = vadd.f32 0.0, %v936
        %938 = vmatmul.f32.gmra.mxu0 %v824
        %v939 = vpop.f32.mrf.mxu0
        %v940 = vadd.f32 0.0, %v939
        %941 = vmatmul.f32.gmra.mxu0 %v827
        %v942 = vpop.f32.mrf.mxu0
        %v943 = vadd.f32 0.0, %v942
        %944 = vmatmul.f32.gmra.mxu0 %v830
        %v945 = vpop.f32.mrf.mxu0
        %v946 = vadd.f32 0.0, %v945
        %947 = vmatmul.f32.gmra.mxu0 %v833
        %v948 = vpop.f32.mrf.mxu0
        %v949 = vadd.f32 0.0, %v948
        %950 = vmatmul.f32.gmra.mxu0 %v836
        %v951 = vpop.f32.mrf.mxu0
        %v952 = vadd.f32 0.0, %v951
        %953 = vmatmul.f32.gmra.mxu0 %v839
        %v954 = vpop.f32.mrf.mxu0
        %v955 = vadd.f32 0.0, %v954
        %956 = vmatmul.f32.gmra.mxu0 %v842
        %v957 = vpop.f32.mrf.mxu0
        %v958 = vadd.f32 0.0, %v957
        %959 = vmatmul.f32.gmra.mxu0 %v845
        %v960 = vpop.f32.mrf.mxu0
        %v961 = vadd.f32 0.0, %v960
        %962 = vmatmul.f32.gmra.mxu0 %v848
        %v963 = vpop.f32.mrf.mxu0
        %v964 = vadd.f32 0.0, %v963
        %965 = vdwg.mxu0
        %v966 = vadd.f32 %v625, %v871
        %v967 = vadd.f32 %v628, %v874
        %v968 = vadd.f32 %v631, %v877
        %v969 = vadd.f32 %v634, %v880
        %v970 = vadd.f32 %v637, %v883
        %v971 = vadd.f32 %v640, %v886
        %v972 = vadd.f32 %v643, %v889
        %v973 = vadd.f32 %v646, %v892
        %v974 = vadd.f32 %v649, %v895
        %v975 = vadd.f32 %v652, %v898
        %v976 = vadd.f32 %v655, %v901
        %v977 = vadd.f32 %v658, %v904
        %v978 = vadd.f32 %v661, %v907
        %v979 = vadd.f32 %v664, %v910
        %v980 = vadd.f32 %v667, %v913
        %v981 = vadd.f32 %v670, %v916
        %v982 = vadd.f32 %v673, %v919
        %v983 = vadd.f32 %v676, %v922
        %v984 = vadd.f32 %v679, %v925
        %v985 = vadd.f32 %v682, %v928
        %v986 = vadd.f32 %v685, %v931
        %v987 = vadd.f32 %v688, %v934
        %v988 = vadd.f32 %v691, %v937
        %v989 = vadd.f32 %v694, %v940
        %v990 = vadd.f32 %v697, %v943
        %v991 = vadd.f32 %v700, %v946
        %v992 = vadd.f32 %v703, %v949
        %v993 = vadd.f32 %v706, %v952
        %v994 = vadd.f32 %v709, %v955
        %v995 = vadd.f32 %v712, %v958
        %v996 = vadd.f32 %v715, %v961
        %v997 = vadd.f32 %v718, %v964
        %s998 = sadd.s32 %s224, 1
        %s999 = smul.u32 %s998, 24
        %s1000 = scalar_lea.vmem %s215, %s999
        %v1001 = vld [vmem:[%s1000] sm:$0xff]
        %v1002 = vld [vmem:[%s1000 + $0x8] sm:$0xff]
        %v1003 = vld [vmem:[%s1000 + $0x18] sm:$0xff]
        %v1004 = vld [vmem:[%s1000 + $0x20] sm:$0xff]
        %v1005 = vld [vmem:[%s1000 + $0x30] sm:$0xff]
        %v1006 = vld [vmem:[%s1000 + $0x38] sm:$0xff]
        %v1007 = vld [vmem:[%s1000 + $0x48] sm:$0xff]
        %v1008 = vld [vmem:[%s1000 + $0x50] sm:$0xff]
        %v1009 = vld [vmem:[%s1000 + $0x60] sm:$0xff]
        %v1010 = vld [vmem:[%s1000 + $0x68] sm:$0xff]
        %v1011 = vld [vmem:[%s1000 + $0x78] sm:$0xff]
        %v1012 = vld [vmem:[%s1000 + $0x80] sm:$0xff]
        %v1013 = vld [vmem:[%s1000 + $0x90] sm:$0xff]
        %v1014 = vld [vmem:[%s1000 + $0x98] sm:$0xff]
        %v1015 = vld [vmem:[%s1000 + $0xa8] sm:$0xff]
        %v1016 = vld [vmem:[%s1000 + $0xb0] sm:$0xff]
        %v1017 = vld [vmem:[%s1000 + $0xc0] sm:$0xff]
        %v1018 = vld [vmem:[%s1000 + $0xc8] sm:$0xff]
        %v1019 = vld [vmem:[%s1000 + $0xd8] sm:$0xff]
        %v1020 = vld [vmem:[%s1000 + $0xe0] sm:$0xff]
        %v1021 = vld [vmem:[%s1000 + $0xf0] sm:$0xff]
        %v1022 = vld [vmem:[%s1000 + $0xf8] sm:$0xff]
        %v1023 = vld [vmem:[%s1000 + $0x108] sm:$0xff]
        %v1024 = vld [vmem:[%s1000 + $0x110] sm:$0xff]
        %v1025 = vld [vmem:[%s1000 + $0x120] sm:$0xff]
        %v1026 = vld [vmem:[%s1000 + $0x128] sm:$0xff]
        %v1027 = vld [vmem:[%s1000 + $0x138] sm:$0xff]
        %v1028 = vld [vmem:[%s1000 + $0x140] sm:$0xff]
        %v1029 = vld [vmem:[%s1000 + $0x150] sm:$0xff]
        %v1030 = vld [vmem:[%s1000 + $0x158] sm:$0xff]
        %v1031 = vld [vmem:[%s1000 + $0x168] sm:$0xff]
        %v1032 = vld [vmem:[%s1000 + $0x170] sm:$0xff]
        %s1033 = scalar_lea.vmem %s219, 12
        %v1034 = vld [vmem:[%s1033] sm:$0xf]
        %v1036 = vsel %vm294, %v1001, 0
        %v1039 = vsel %vm294, %v1002, 0
        %v1042 = vsel %vm294, %v1003, 0
        %v1045 = vsel %vm294, %v1004, 0
        %v1048 = vsel %vm294, %v1005, 0
        %v1051 = vsel %vm294, %v1006, 0
        %v1054 = vsel %vm294, %v1007, 0
        %v1057 = vsel %vm294, %v1008, 0
        %v1060 = vsel %vm294, %v1009, 0
        %v1063 = vsel %vm294, %v1010, 0
        %v1066 = vsel %vm294, %v1011, 0
        %v1069 = vsel %vm294, %v1012, 0
        %v1072 = vsel %vm294, %v1013, 0
        %v1075 = vsel %vm294, %v1014, 0
        %v1078 = vsel %vm294, %v1015, 0
        %v1081 = vsel %vm294, %v1016, 0
        %v1084 = vsel %vm294, %v1017, 0
        %v1087 = vsel %vm294, %v1018, 0
        %v1090 = vsel %vm294, %v1019, 0
        %v1093 = vsel %vm294, %v1020, 0
        %v1096 = vsel %vm294, %v1021, 0
        %v1099 = vsel %vm294, %v1022, 0
        %v1102 = vsel %vm294, %v1023, 0
        %v1105 = vsel %vm294, %v1024, 0
        %v1108 = vsel %vm294, %v1025, 0
        %v1111 = vsel %vm294, %v1026, 0
        %v1114 = vsel %vm294, %v1027, 0
        %v1117 = vsel %vm294, %v1028, 0
        %v1120 = vsel %vm294, %v1029, 0
        %v1123 = vsel %vm294, %v1030, 0
        %v1126 = vsel %vm294, %v1031, 0
        %v1129 = vsel %vm294, %v1032, 0
        %v1132 = vsel %vm391, %v1034, 0
        %1134 = vmatpush.msra.mxu0 0.0
        %1135 = vmatpush.msra.mxu0 0.0
        %1136 = vmatpush.msra.mxu0 0.0
        %1137 = vmatpush.msra.mxu0 0.0
        %1138 = vmatpush.msra.mxu0 0.0
        %1139 = vmatpush.msra.mxu0 0.0
        %1140 = vmatpush.msra.mxu0 0.0
        %1141 = vmatpush.msra.mxu0 0.0
        %1142 = vmatpush.msra.mxu0 0.0
        %1143 = vmatpush.msra.mxu0 0.0
        %1144 = vmatpush.msra.mxu0 0.0
        %1145 = vmatpush.msra.mxu0 0.0
        %1146 = vmatpush.msra.mxu0 0.0
        %1147 = vmatpush.msra.mxu0 0.0
        %1148 = vmatpush.msra.mxu0 0.0
        %1149 = vmatpush.msra.mxu0 %v1132
        %1150 = vmatmul.f32.gmra.mxu0 %v1036
        %v1151 = vpop.f32.mrf.mxu0
        %v1152 = vadd.f32 0.0, %v1151
        %1153 = vmatmul.f32.gmra.mxu0 %v1039
        %v1154 = vpop.f32.mrf.mxu0
        %v1155 = vadd.f32 0.0, %v1154
        %1156 = vmatmul.f32.gmra.mxu0 %v1042
        %v1157 = vpop.f32.mrf.mxu0
        %v1158 = vadd.f32 0.0, %v1157
        %1159 = vmatmul.f32.gmra.mxu0 %v1045
        %v1160 = vpop.f32.mrf.mxu0
        %v1161 = vadd.f32 0.0, %v1160
        %1162 = vmatmul.f32.gmra.mxu0 %v1048
        %v1163 = vpop.f32.mrf.mxu0
        %v1164 = vadd.f32 0.0, %v1163
        %1165 = vmatmul.f32.gmra.mxu0 %v1051
        %v1166 = vpop.f32.mrf.mxu0
        %v1167 = vadd.f32 0.0, %v1166
        %1168 = vmatmul.f32.gmra.mxu0 %v1054
        %v1169 = vpop.f32.mrf.mxu0
        %v1170 = vadd.f32 0.0, %v1169
        %1171 = vmatmul.f32.gmra.mxu0 %v1057
        %v1172 = vpop.f32.mrf.mxu0
        %v1173 = vadd.f32 0.0, %v1172
        %1174 = vmatmul.f32.gmra.mxu0 %v1060
        %v1175 = vpop.f32.mrf.mxu0
        %v1176 = vadd.f32 0.0, %v1175
        %1177 = vmatmul.f32.gmra.mxu0 %v1063
        %v1178 = vpop.f32.mrf.mxu0
        %v1179 = vadd.f32 0.0, %v1178
        %1180 = vmatmul.f32.gmra.mxu0 %v1066
        %v1181 = vpop.f32.mrf.mxu0
        %v1182 = vadd.f32 0.0, %v1181
        %1183 = vmatmul.f32.gmra.mxu0 %v1069
        %v1184 = vpop.f32.mrf.mxu0
        %v1185 = vadd.f32 0.0, %v1184
        %1186 = vmatmul.f32.gmra.mxu0 %v1072
        %v1187 = vpop.f32.mrf.mxu0
        %v1188 = vadd.f32 0.0, %v1187
        %1189 = vmatmul.f32.gmra.mxu0 %v1075
        %v1190 = vpop.f32.mrf.mxu0
        %v1191 = vadd.f32 0.0, %v1190
        %1192 = vmatmul.f32.gmra.mxu0 %v1078
        %v1193 = vpop.f32.mrf.mxu0
        %v1194 = vadd.f32 0.0, %v1193
        %1195 = vmatmul.f32.gmra.mxu0 %v1081
        %v1196 = vpop.f32.mrf.mxu0
        %v1197 = vadd.f32 0.0, %v1196
        %1198 = vmatmul.f32.gmra.mxu0 %v1084
        %v1199 = vpop.f32.mrf.mxu0
        %v1200 = vadd.f32 0.0, %v1199
        %1201 = vmatmul.f32.gmra.mxu0 %v1087
        %v1202 = vpop.f32.mrf.mxu0
        %v1203 = vadd.f32 0.0, %v1202
        %1204 = vmatmul.f32.gmra.mxu0 %v1090
        %v1205 = vpop.f32.mrf.mxu0
        %v1206 = vadd.f32 0.0, %v1205
        %1207 = vmatmul.f32.gmra.mxu0 %v1093
        %v1208 = vpop.f32.mrf.mxu0
        %v1209 = vadd.f32 0.0, %v1208
        %1210 = vmatmul.f32.gmra.mxu0 %v1096
        %v1211 = vpop.f32.mrf.mxu0
        %v1212 = vadd.f32 0.0, %v1211
        %1213 = vmatmul.f32.gmra.mxu0 %v1099
        %v1214 = vpop.f32.mrf.mxu0
        %v1215 = vadd.f32 0.0, %v1214
        %1216 = vmatmul.f32.gmra.mxu0 %v1102
        %v1217 = vpop.f32.mrf.mxu0
        %v1218 = vadd.f32 0.0, %v1217
        %1219 = vmatmul.f32.gmra.mxu0 %v1105
        %v1220 = vpop.f32.mrf.mxu0
        %v1221 = vadd.f32 0.0, %v1220
        %1222 = vmatmul.f32.gmra.mxu0 %v1108
        %v1223 = vpop.f32.mrf.mxu0
        %v1224 = vadd.f32 0.0, %v1223
        %1225 = vmatmul.f32.gmra.mxu0 %v1111
        %v1226 = vpop.f32.mrf.mxu0
        %v1227 = vadd.f32 0.0, %v1226
        %1228 = vmatmul.f32.gmra.mxu0 %v1114
        %v1229 = vpop.f32.mrf.mxu0
        %v1230 = vadd.f32 0.0, %v1229
        %1231 = vmatmul.f32.gmra.mxu0 %v1117
        %v1232 = vpop.f32.mrf.mxu0
        %v1233 = vadd.f32 0.0, %v1232
        %1234 = vmatmul.f32.gmra.mxu0 %v1120
        %v1235 = vpop.f32.mrf.mxu0
        %v1236 = vadd.f32 0.0, %v1235
        %1237 = vmatmul.f32.gmra.mxu0 %v1123
        %v1238 = vpop.f32.mrf.mxu0
        %v1239 = vadd.f32 0.0, %v1238
        %1240 = vmatmul.f32.gmra.mxu0 %v1126
        %v1241 = vpop.f32.mrf.mxu0
        %v1242 = vadd.f32 0.0, %v1241
        %1243 = vmatmul.f32.gmra.mxu0 %v1129
        %v1244 = vpop.f32.mrf.mxu0
        %v1245 = vadd.f32 0.0, %v1244
        %1246 = vdwg.mxu0
        %v1247 = vadd.f32 %v966, %v1152
        %v1248 = vadd.f32 %v967, %v1155
        %v1249 = vadd.f32 %v968, %v1158
        %v1250 = vadd.f32 %v969, %v1161
        %v1251 = vadd.f32 %v970, %v1164
        %v1252 = vadd.f32 %v971, %v1167
        %v1253 = vadd.f32 %v972, %v1170
        %v1254 = vadd.f32 %v973, %v1173
        %v1255 = vadd.f32 %v974, %v1176
        %v1256 = vadd.f32 %v975, %v1179
        %v1257 = vadd.f32 %v976, %v1182
        %v1258 = vadd.f32 %v977, %v1185
        %v1259 = vadd.f32 %v978, %v1188
        %v1260 = vadd.f32 %v979, %v1191
        %v1261 = vadd.f32 %v980, %v1194
        %v1262 = vadd.f32 %v981, %v1197
        %v1263 = vadd.f32 %v982, %v1200
        %v1264 = vadd.f32 %v983, %v1203
        %v1265 = vadd.f32 %v984, %v1206
        %v1266 = vadd.f32 %v985, %v1209
        %v1267 = vadd.f32 %v986, %v1212
        %v1268 = vadd.f32 %v987, %v1215
        %v1269 = vadd.f32 %v988, %v1218
        %v1270 = vadd.f32 %v989, %v1221
        %v1271 = vadd.f32 %v990, %v1224
        %v1272 = vadd.f32 %v991, %v1227
        %v1273 = vadd.f32 %v992, %v1230
        %v1274 = vadd.f32 %v993, %v1233
        %v1275 = vadd.f32 %v994, %v1236
        %v1276 = vadd.f32 %v995, %v1239
        %v1277 = vadd.f32 %v996, %v1242
        %v1278 = vadd.f32 %v997, %v1245
        %v1279 = vld [vmem:[%s1000 + $0x1] sm:$0xff]
        %v1280 = vld [vmem:[%s1000 + $0x9] sm:$0xff]
        %v1281 = vld [vmem:[%s1000 + $0x19] sm:$0xff]
        %v1282 = vld [vmem:[%s1000 + $0x21] sm:$0xff]
        %v1283 = vld [vmem:[%s1000 + $0x31] sm:$0xff]
        %v1284 = vld [vmem:[%s1000 + $0x39] sm:$0xff]
        %v1285 = vld [vmem:[%s1000 + $0x49] sm:$0xff]
        %v1286 = vld [vmem:[%s1000 + $0x51] sm:$0xff]
        %v1287 = vld [vmem:[%s1000 + $0x61] sm:$0xff]
        %v1288 = vld [vmem:[%s1000 + $0x69] sm:$0xff]
        %v1289 = vld [vmem:[%s1000 + $0x79] sm:$0xff]
        %v1290 = vld [vmem:[%s1000 + $0x81] sm:$0xff]
        %v1291 = vld [vmem:[%s1000 + $0x91] sm:$0xff]
        %v1292 = vld [vmem:[%s1000 + $0x99] sm:$0xff]
        %v1293 = vld [vmem:[%s1000 + $0xa9] sm:$0xff]
        %v1294 = vld [vmem:[%s1000 + $0xb1] sm:$0xff]
        %v1295 = vld [vmem:[%s1000 + $0xc1] sm:$0xff]
        %v1296 = vld [vmem:[%s1000 + $0xc9] sm:$0xff]
        %v1297 = vld [vmem:[%s1000 + $0xd9] sm:$0xff]
        %v1298 = vld [vmem:[%s1000 + $0xe1] sm:$0xff]
        %v1299 = vld [vmem:[%s1000 + $0xf1] sm:$0xff]
        %v1300 = vld [vmem:[%s1000 + $0xf9] sm:$0xff]
        %v1301 = vld [vmem:[%s1000 + $0x109] sm:$0xff]
        %v1302 = vld [vmem:[%s1000 + $0x111] sm:$0xff]
        %v1303 = vld [vmem:[%s1000 + $0x121] sm:$0xff]
        %v1304 = vld [vmem:[%s1000 + $0x129] sm:$0xff]
        %v1305 = vld [vmem:[%s1000 + $0x139] sm:$0xff]
        %v1306 = vld [vmem:[%s1000 + $0x141] sm:$0xff]
        %v1307 = vld [vmem:[%s1000 + $0x151] sm:$0xff]
        %v1308 = vld [vmem:[%s1000 + $0x159] sm:$0xff]
        %v1309 = vld [vmem:[%s1000 + $0x169] sm:$0xff]
        %v1310 = vld [vmem:[%s1000 + $0x171] sm:$0xff]
        %s1311 = scalar_lea.vmem %s219, 16
        %v1312 = vld [vmem:[%s1311] sm:$0xf]
        %v1314 = vsel %vm294, %v1279, 0
        %v1317 = vsel %vm294, %v1280, 0
        %v1320 = vsel %vm294, %v1281, 0
        %v1323 = vsel %vm294, %v1282, 0
        %v1326 = vsel %vm294, %v1283, 0
        %v1329 = vsel %vm294, %v1284, 0
        %v1332 = vsel %vm294, %v1285, 0
        %v1335 = vsel %vm294, %v1286, 0
        %v1338 = vsel %vm294, %v1287, 0
        %v1341 = vsel %vm294, %v1288, 0
        %v1344 = vsel %vm294, %v1289, 0
        %v1347 = vsel %vm294, %v1290, 0
        %v1350 = vsel %vm294, %v1291, 0
        %v1353 = vsel %vm294, %v1292, 0
        %v1356 = vsel %vm294, %v1293, 0
        %v1359 = vsel %vm294, %v1294, 0
        %v1362 = vsel %vm294, %v1295, 0
        %v1365 = vsel %vm294, %v1296, 0
        %v1368 = vsel %vm294, %v1297, 0
        %v1371 = vsel %vm294, %v1298, 0
        %v1374 = vsel %vm294, %v1299, 0
        %v1377 = vsel %vm294, %v1300, 0
        %v1380 = vsel %vm294, %v1301, 0
        %v1383 = vsel %vm294, %v1302, 0
        %v1386 = vsel %vm294, %v1303, 0
        %v1389 = vsel %vm294, %v1304, 0
        %v1392 = vsel %vm294, %v1305, 0
        %v1395 = vsel %vm294, %v1306, 0
        %v1398 = vsel %vm294, %v1307, 0
        %v1401 = vsel %vm294, %v1308, 0
        %v1404 = vsel %vm294, %v1309, 0
        %v1407 = vsel %vm294, %v1310, 0
        %v1410 = vsel %vm391, %v1312, 0
        %1412 = vmatpush.msra.mxu0 0.0
        %1413 = vmatpush.msra.mxu0 0.0
        %1414 = vmatpush.msra.mxu0 0.0
        %1415 = vmatpush.msra.mxu0 0.0
        %1416 = vmatpush.msra.mxu0 0.0
        %1417 = vmatpush.msra.mxu0 0.0
        %1418 = vmatpush.msra.mxu0 0.0
        %1419 = vmatpush.msra.mxu0 0.0
        %1420 = vmatpush.msra.mxu0 0.0
        %1421 = vmatpush.msra.mxu0 0.0
        %1422 = vmatpush.msra.mxu0 0.0
        %1423 = vmatpush.msra.mxu0 0.0
        %1424 = vmatpush.msra.mxu0 0.0
        %1425 = vmatpush.msra.mxu0 0.0
        %1426 = vmatpush.msra.mxu0 0.0
        %1427 = vmatpush.msra.mxu0 %v1410
        %1428 = vmatmul.f32.gmra.mxu0 %v1314
        %v1429 = vpop.f32.mrf.mxu0
        %v1430 = vadd.f32 0.0, %v1429
        %1431 = vmatmul.f32.gmra.mxu0 %v1317
        %v1432 = vpop.f32.mrf.mxu0
        %v1433 = vadd.f32 0.0, %v1432
        %1434 = vmatmul.f32.gmra.mxu0 %v1320
        %v1435 = vpop.f32.mrf.mxu0
        %v1436 = vadd.f32 0.0, %v1435
        %1437 = vmatmul.f32.gmra.mxu0 %v1323
        %v1438 = vpop.f32.mrf.mxu0
        %v1439 = vadd.f32 0.0, %v1438
        %1440 = vmatmul.f32.gmra.mxu0 %v1326
        %v1441 = vpop.f32.mrf.mxu0
        %v1442 = vadd.f32 0.0, %v1441
        %1443 = vmatmul.f32.gmra.mxu0 %v1329
        %v1444 = vpop.f32.mrf.mxu0
        %v1445 = vadd.f32 0.0, %v1444
        %1446 = vmatmul.f32.gmra.mxu0 %v1332
        %v1447 = vpop.f32.mrf.mxu0
        %v1448 = vadd.f32 0.0, %v1447
        %1449 = vmatmul.f32.gmra.mxu0 %v1335
        %v1450 = vpop.f32.mrf.mxu0
        %v1451 = vadd.f32 0.0, %v1450
        %1452 = vmatmul.f32.gmra.mxu0 %v1338
        %v1453 = vpop.f32.mrf.mxu0
        %v1454 = vadd.f32 0.0, %v1453
        %1455 = vmatmul.f32.gmra.mxu0 %v1341
        %v1456 = vpop.f32.mrf.mxu0
        %v1457 = vadd.f32 0.0, %v1456
        %1458 = vmatmul.f32.gmra.mxu0 %v1344
        %v1459 = vpop.f32.mrf.mxu0
        %v1460 = vadd.f32 0.0, %v1459
        %1461 = vmatmul.f32.gmra.mxu0 %v1347
        %v1462 = vpop.f32.mrf.mxu0
        %v1463 = vadd.f32 0.0, %v1462
        %1464 = vmatmul.f32.gmra.mxu0 %v1350
        %v1465 = vpop.f32.mrf.mxu0
        %v1466 = vadd.f32 0.0, %v1465
        %1467 = vmatmul.f32.gmra.mxu0 %v1353
        %v1468 = vpop.f32.mrf.mxu0
        %v1469 = vadd.f32 0.0, %v1468
        %1470 = vmatmul.f32.gmra.mxu0 %v1356
        %v1471 = vpop.f32.mrf.mxu0
        %v1472 = vadd.f32 0.0, %v1471
        %1473 = vmatmul.f32.gmra.mxu0 %v1359
        %v1474 = vpop.f32.mrf.mxu0
        %v1475 = vadd.f32 0.0, %v1474
        %1476 = vmatmul.f32.gmra.mxu0 %v1362
        %v1477 = vpop.f32.mrf.mxu0
        %v1478 = vadd.f32 0.0, %v1477
        %1479 = vmatmul.f32.gmra.mxu0 %v1365
        %v1480 = vpop.f32.mrf.mxu0
        %v1481 = vadd.f32 0.0, %v1480
        %1482 = vmatmul.f32.gmra.mxu0 %v1368
        %v1483 = vpop.f32.mrf.mxu0
        %v1484 = vadd.f32 0.0, %v1483
        %1485 = vmatmul.f32.gmra.mxu0 %v1371
        %v1486 = vpop.f32.mrf.mxu0
        %v1487 = vadd.f32 0.0, %v1486
        %1488 = vmatmul.f32.gmra.mxu0 %v1374
        %v1489 = vpop.f32.mrf.mxu0
        %v1490 = vadd.f32 0.0, %v1489
        %1491 = vmatmul.f32.gmra.mxu0 %v1377
        %v1492 = vpop.f32.mrf.mxu0
        %v1493 = vadd.f32 0.0, %v1492
        %1494 = vmatmul.f32.gmra.mxu0 %v1380
        %v1495 = vpop.f32.mrf.mxu0
        %v1496 = vadd.f32 0.0, %v1495
        %1497 = vmatmul.f32.gmra.mxu0 %v1383
        %v1498 = vpop.f32.mrf.mxu0
        %v1499 = vadd.f32 0.0, %v1498
        %1500 = vmatmul.f32.gmra.mxu0 %v1386
        %v1501 = vpop.f32.mrf.mxu0
        %v1502 = vadd.f32 0.0, %v1501
        %1503 = vmatmul.f32.gmra.mxu0 %v1389
        %v1504 = vpop.f32.mrf.mxu0
        %v1505 = vadd.f32 0.0, %v1504
        %1506 = vmatmul.f32.gmra.mxu0 %v1392
        %v1507 = vpop.f32.mrf.mxu0
        %v1508 = vadd.f32 0.0, %v1507
        %1509 = vmatmul.f32.gmra.mxu0 %v1395
        %v1510 = vpop.f32.mrf.mxu0
        %v1511 = vadd.f32 0.0, %v1510
        %1512 = vmatmul.f32.gmra.mxu0 %v1398
        %v1513 = vpop.f32.mrf.mxu0
        %v1514 = vadd.f32 0.0, %v1513
        %1515 = vmatmul.f32.gmra.mxu0 %v1401
        %v1516 = vpop.f32.mrf.mxu0
        %v1517 = vadd.f32 0.0, %v1516
        %1518 = vmatmul.f32.gmra.mxu0 %v1404
        %v1519 = vpop.f32.mrf.mxu0
        %v1520 = vadd.f32 0.0, %v1519
        %1521 = vmatmul.f32.gmra.mxu0 %v1407
        %v1522 = vpop.f32.mrf.mxu0
        %v1523 = vadd.f32 0.0, %v1522
        %1524 = vdwg.mxu0
        %v1525 = vadd.f32 %v1247, %v1430
        %v1526 = vadd.f32 %v1248, %v1433
        %v1527 = vadd.f32 %v1249, %v1436
        %v1528 = vadd.f32 %v1250, %v1439
        %v1529 = vadd.f32 %v1251, %v1442
        %v1530 = vadd.f32 %v1252, %v1445
        %v1531 = vadd.f32 %v1253, %v1448
        %v1532 = vadd.f32 %v1254, %v1451
        %v1533 = vadd.f32 %v1255, %v1454
        %v1534 = vadd.f32 %v1256, %v1457
        %v1535 = vadd.f32 %v1257, %v1460
        %v1536 = vadd.f32 %v1258, %v1463
        %v1537 = vadd.f32 %v1259, %v1466
        %v1538 = vadd.f32 %v1260, %v1469
        %v1539 = vadd.f32 %v1261, %v1472
        %v1540 = vadd.f32 %v1262, %v1475
        %v1541 = vadd.f32 %v1263, %v1478
        %v1542 = vadd.f32 %v1264, %v1481
        %v1543 = vadd.f32 %v1265, %v1484
        %v1544 = vadd.f32 %v1266, %v1487
        %v1545 = vadd.f32 %v1267, %v1490
        %v1546 = vadd.f32 %v1268, %v1493
        %v1547 = vadd.f32 %v1269, %v1496
        %v1548 = vadd.f32 %v1270, %v1499
        %v1549 = vadd.f32 %v1271, %v1502
        %v1550 = vadd.f32 %v1272, %v1505
        %v1551 = vadd.f32 %v1273, %v1508
        %v1552 = vadd.f32 %v1274, %v1511
        %v1553 = vadd.f32 %v1275, %v1514
        %v1554 = vadd.f32 %v1276, %v1517
        %v1555 = vadd.f32 %v1277, %v1520
        %v1556 = vadd.f32 %v1278, %v1523
        %v1557 = vld [vmem:[%s1000 + $0x2] sm:$0xff]
        %v1558 = vld [vmem:[%s1000 + $0xa] sm:$0xff]
        %v1559 = vld [vmem:[%s1000 + $0x1a] sm:$0xff]
        %v1560 = vld [vmem:[%s1000 + $0x22] sm:$0xff]
        %v1561 = vld [vmem:[%s1000 + $0x32] sm:$0xff]
        %v1562 = vld [vmem:[%s1000 + $0x3a] sm:$0xff]
        %v1563 = vld [vmem:[%s1000 + $0x4a] sm:$0xff]
        %v1564 = vld [vmem:[%s1000 + $0x52] sm:$0xff]
        %v1565 = vld [vmem:[%s1000 + $0x62] sm:$0xff]
        %v1566 = vld [vmem:[%s1000 + $0x6a] sm:$0xff]
        %v1567 = vld [vmem:[%s1000 + $0x7a] sm:$0xff]
        %v1568 = vld [vmem:[%s1000 + $0x82] sm:$0xff]
        %v1569 = vld [vmem:[%s1000 + $0x92] sm:$0xff]
        %v1570 = vld [vmem:[%s1000 + $0x9a] sm:$0xff]
        %v1571 = vld [vmem:[%s1000 + $0xaa] sm:$0xff]
        %v1572 = vld [vmem:[%s1000 + $0xb2] sm:$0xff]
        %v1573 = vld [vmem:[%s1000 + $0xc2] sm:$0xff]
        %v1574 = vld [vmem:[%s1000 + $0xca] sm:$0xff]
        %v1575 = vld [vmem:[%s1000 + $0xda] sm:$0xff]
        %v1576 = vld [vmem:[%s1000 + $0xe2] sm:$0xff]
        %v1577 = vld [vmem:[%s1000 + $0xf2] sm:$0xff]
        %v1578 = vld [vmem:[%s1000 + $0xfa] sm:$0xff]
        %v1579 = vld [vmem:[%s1000 + $0x10a] sm:$0xff]
        %v1580 = vld [vmem:[%s1000 + $0x112] sm:$0xff]
        %v1581 = vld [vmem:[%s1000 + $0x122] sm:$0xff]
        %v1582 = vld [vmem:[%s1000 + $0x12a] sm:$0xff]
        %v1583 = vld [vmem:[%s1000 + $0x13a] sm:$0xff]
        %v1584 = vld [vmem:[%s1000 + $0x142] sm:$0xff]
        %v1585 = vld [vmem:[%s1000 + $0x152] sm:$0xff]
        %v1586 = vld [vmem:[%s1000 + $0x15a] sm:$0xff]
        %v1587 = vld [vmem:[%s1000 + $0x16a] sm:$0xff]
        %v1588 = vld [vmem:[%s1000 + $0x172] sm:$0xff]
        %s1589 = scalar_lea.vmem %s219, 20
        %v1590 = vld [vmem:[%s1589] sm:$0xf]
        %v1592 = vsel %vm294, %v1557, 0
        %v1595 = vsel %vm294, %v1558, 0
        %v1598 = vsel %vm294, %v1559, 0
        %v1601 = vsel %vm294, %v1560, 0
        %v1604 = vsel %vm294, %v1561, 0
        %v1607 = vsel %vm294, %v1562, 0
        %v1610 = vsel %vm294, %v1563, 0
        %v1613 = vsel %vm294, %v1564, 0
        %v1616 = vsel %vm294, %v1565, 0
        %v1619 = vsel %vm294, %v1566, 0
        %v1622 = vsel %vm294, %v1567, 0
        %v1625 = vsel %vm294, %v1568, 0
        %v1628 = vsel %vm294, %v1569, 0
        %v1631 = vsel %vm294, %v1570, 0
        %v1634 = vsel %vm294, %v1571, 0
        %v1637 = vsel %vm294, %v1572, 0
        %v1640 = vsel %vm294, %v1573, 0
        %v1643 = vsel %vm294, %v1574, 0
        %v1646 = vsel %vm294, %v1575, 0
        %v1649 = vsel %vm294, %v1576, 0
        %v1652 = vsel %vm294, %v1577, 0
        %v1655 = vsel %vm294, %v1578, 0
        %v1658 = vsel %vm294, %v1579, 0
        %v1661 = vsel %vm294, %v1580, 0
        %v1664 = vsel %vm294, %v1581, 0
        %v1667 = vsel %vm294, %v1582, 0
        %v1670 = vsel %vm294, %v1583, 0
        %v1673 = vsel %vm294, %v1584, 0
        %v1676 = vsel %vm294, %v1585, 0
        %v1679 = vsel %vm294, %v1586, 0
        %v1682 = vsel %vm294, %v1587, 0
        %v1685 = vsel %vm294, %v1588, 0
        %v1688 = vsel %vm391, %v1590, 0
        %1690 = vmatpush.msra.mxu0 0.0
        %1691 = vmatpush.msra.mxu0 0.0
        %1692 = vmatpush.msra.mxu0 0.0
        %1693 = vmatpush.msra.mxu0 0.0
        %1694 = vmatpush.msra.mxu0 0.0
        %1695 = vmatpush.msra.mxu0 0.0
        %1696 = vmatpush.msra.mxu0 0.0
        %1697 = vmatpush.msra.mxu0 0.0
        %1698 = vmatpush.msra.mxu0 0.0
        %1699 = vmatpush.msra.mxu0 0.0
        %1700 = vmatpush.msra.mxu0 0.0
        %1701 = vmatpush.msra.mxu0 0.0
        %1702 = vmatpush.msra.mxu0 0.0
        %1703 = vmatpush.msra.mxu0 0.0
        %1704 = vmatpush.msra.mxu0 0.0
        %1705 = vmatpush.msra.mxu0 %v1688
        %1706 = vmatmul.f32.gmra.mxu0 %v1592
        %v1707 = vpop.f32.mrf.mxu0
        %v1708 = vadd.f32 0.0, %v1707
        %1709 = vmatmul.f32.gmra.mxu0 %v1595
        %v1710 = vpop.f32.mrf.mxu0
        %v1711 = vadd.f32 0.0, %v1710
        %1712 = vmatmul.f32.gmra.mxu0 %v1598
        %v1713 = vpop.f32.mrf.mxu0
        %v1714 = vadd.f32 0.0, %v1713
        %1715 = vmatmul.f32.gmra.mxu0 %v1601
        %v1716 = vpop.f32.mrf.mxu0
        %v1717 = vadd.f32 0.0, %v1716
        %1718 = vmatmul.f32.gmra.mxu0 %v1604
        %v1719 = vpop.f32.mrf.mxu0
        %v1720 = vadd.f32 0.0, %v1719
        %1721 = vmatmul.f32.gmra.mxu0 %v1607
        %v1722 = vpop.f32.mrf.mxu0
        %v1723 = vadd.f32 0.0, %v1722
        %1724 = vmatmul.f32.gmra.mxu0 %v1610
        %v1725 = vpop.f32.mrf.mxu0
        %v1726 = vadd.f32 0.0, %v1725
        %1727 = vmatmul.f32.gmra.mxu0 %v1613
        %v1728 = vpop.f32.mrf.mxu0
        %v1729 = vadd.f32 0.0, %v1728
        %1730 = vmatmul.f32.gmra.mxu0 %v1616
        %v1731 = vpop.f32.mrf.mxu0
        %v1732 = vadd.f32 0.0, %v1731
        %1733 = vmatmul.f32.gmra.mxu0 %v1619
        %v1734 = vpop.f32.mrf.mxu0
        %v1735 = vadd.f32 0.0, %v1734
        %1736 = vmatmul.f32.gmra.mxu0 %v1622
        %v1737 = vpop.f32.mrf.mxu0
        %v1738 = vadd.f32 0.0, %v1737
        %1739 = vmatmul.f32.gmra.mxu0 %v1625
        %v1740 = vpop.f32.mrf.mxu0
        %v1741 = vadd.f32 0.0, %v1740
        %1742 = vmatmul.f32.gmra.mxu0 %v1628
        %v1743 = vpop.f32.mrf.mxu0
        %v1744 = vadd.f32 0.0, %v1743
        %1745 = vmatmul.f32.gmra.mxu0 %v1631
        %v1746 = vpop.f32.mrf.mxu0
        %v1747 = vadd.f32 0.0, %v1746
        %1748 = vmatmul.f32.gmra.mxu0 %v1634
        %v1749 = vpop.f32.mrf.mxu0
        %v1750 = vadd.f32 0.0, %v1749
        %1751 = vmatmul.f32.gmra.mxu0 %v1637
        %v1752 = vpop.f32.mrf.mxu0
        %v1753 = vadd.f32 0.0, %v1752
        %1754 = vmatmul.f32.gmra.mxu0 %v1640
        %v1755 = vpop.f32.mrf.mxu0
        %v1756 = vadd.f32 0.0, %v1755
        %1757 = vmatmul.f32.gmra.mxu0 %v1643
        %v1758 = vpop.f32.mrf.mxu0
        %v1759 = vadd.f32 0.0, %v1758
        %1760 = vmatmul.f32.gmra.mxu0 %v1646
        %v1761 = vpop.f32.mrf.mxu0
        %v1762 = vadd.f32 0.0, %v1761
        %1763 = vmatmul.f32.gmra.mxu0 %v1649
        %v1764 = vpop.f32.mrf.mxu0
        %v1765 = vadd.f32 0.0, %v1764
        %1766 = vmatmul.f32.gmra.mxu0 %v1652
        %v1767 = vpop.f32.mrf.mxu0
        %v1768 = vadd.f32 0.0, %v1767
        %1769 = vmatmul.f32.gmra.mxu0 %v1655
        %v1770 = vpop.f32.mrf.mxu0
        %v1771 = vadd.f32 0.0, %v1770
        %1772 = vmatmul.f32.gmra.mxu0 %v1658
        %v1773 = vpop.f32.mrf.mxu0
        %v1774 = vadd.f32 0.0, %v1773
        %1775 = vmatmul.f32.gmra.mxu0 %v1661
        %v1776 = vpop.f32.mrf.mxu0
        %v1777 = vadd.f32 0.0, %v1776
        %1778 = vmatmul.f32.gmra.mxu0 %v1664
        %v1779 = vpop.f32.mrf.mxu0
        %v1780 = vadd.f32 0.0, %v1779
        %1781 = vmatmul.f32.gmra.mxu0 %v1667
        %v1782 = vpop.f32.mrf.mxu0
        %v1783 = vadd.f32 0.0, %v1782
        %1784 = vmatmul.f32.gmra.mxu0 %v1670
        %v1785 = vpop.f32.mrf.mxu0
        %v1786 = vadd.f32 0.0, %v1785
        %1787 = vmatmul.f32.gmra.mxu0 %v1673
        %v1788 = vpop.f32.mrf.mxu0
        %v1789 = vadd.f32 0.0, %v1788
        %1790 = vmatmul.f32.gmra.mxu0 %v1676
        %v1791 = vpop.f32.mrf.mxu0
        %v1792 = vadd.f32 0.0, %v1791
        %1793 = vmatmul.f32.gmra.mxu0 %v1679
        %v1794 = vpop.f32.mrf.mxu0
        %v1795 = vadd.f32 0.0, %v1794
        %1796 = vmatmul.f32.gmra.mxu0 %v1682
        %v1797 = vpop.f32.mrf.mxu0
        %v1798 = vadd.f32 0.0, %v1797
        %1799 = vmatmul.f32.gmra.mxu0 %v1685
        %v1800 = vpop.f32.mrf.mxu0
        %v1801 = vadd.f32 0.0, %v1800
        %1802 = vdwg.mxu0
        %v1803 = vadd.f32 %v1525, %v1708
        %v1804 = vadd.f32 %v1526, %v1711
        %v1805 = vadd.f32 %v1527, %v1714
        %v1806 = vadd.f32 %v1528, %v1717
        %v1807 = vadd.f32 %v1529, %v1720
        %v1808 = vadd.f32 %v1530, %v1723
        %v1809 = vadd.f32 %v1531, %v1726
        %v1810 = vadd.f32 %v1532, %v1729
        %v1811 = vadd.f32 %v1533, %v1732
        %v1812 = vadd.f32 %v1534, %v1735
        %v1813 = vadd.f32 %v1535, %v1738
        %v1814 = vadd.f32 %v1536, %v1741
        %v1815 = vadd.f32 %v1537, %v1744
        %v1816 = vadd.f32 %v1538, %v1747
        %v1817 = vadd.f32 %v1539, %v1750
        %v1818 = vadd.f32 %v1540, %v1753
        %v1819 = vadd.f32 %v1541, %v1756
        %v1820 = vadd.f32 %v1542, %v1759
        %v1821 = vadd.f32 %v1543, %v1762
        %v1822 = vadd.f32 %v1544, %v1765
        %v1823 = vadd.f32 %v1545, %v1768
        %v1824 = vadd.f32 %v1546, %v1771
        %v1825 = vadd.f32 %v1547, %v1774
        %v1826 = vadd.f32 %v1548, %v1777
        %v1827 = vadd.f32 %v1549, %v1780
        %v1828 = vadd.f32 %v1550, %v1783
        %v1829 = vadd.f32 %v1551, %v1786
        %v1830 = vadd.f32 %v1552, %v1789
        %v1831 = vadd.f32 %v1553, %v1792
        %v1832 = vadd.f32 %v1554, %v1795
        %v1833 = vadd.f32 %v1555, %v1798
        %v1834 = vadd.f32 %v1556, %v1801
        %s1835 = sadd.s32 %s224, 2
        %s1836 = smul.u32 %s1835, 24
        %s1837 = scalar_lea.vmem %s215, %s1836
        %v1838 = vld [vmem:[%s1837] sm:$0xff]
        %v1839 = vld [vmem:[%s1837 + $0x8] sm:$0xff]
        %v1840 = vld [vmem:[%s1837 + $0x18] sm:$0xff]
        %v1841 = vld [vmem:[%s1837 + $0x20] sm:$0xff]
        %v1842 = vld [vmem:[%s1837 + $0x30] sm:$0xff]
        %v1843 = vld [vmem:[%s1837 + $0x38] sm:$0xff]
        %v1844 = vld [vmem:[%s1837 + $0x48] sm:$0xff]
        %v1845 = vld [vmem:[%s1837 + $0x50] sm:$0xff]
        %v1846 = vld [vmem:[%s1837 + $0x60] sm:$0xff]
        %v1847 = vld [vmem:[%s1837 + $0x68] sm:$0xff]
        %v1848 = vld [vmem:[%s1837 + $0x78] sm:$0xff]
        %v1849 = vld [vmem:[%s1837 + $0x80] sm:$0xff]
        %v1850 = vld [vmem:[%s1837 + $0x90] sm:$0xff]
        %v1851 = vld [vmem:[%s1837 + $0x98] sm:$0xff]
        %v1852 = vld [vmem:[%s1837 + $0xa8] sm:$0xff]
        %v1853 = vld [vmem:[%s1837 + $0xb0] sm:$0xff]
        %v1854 = vld [vmem:[%s1837 + $0xc0] sm:$0xff]
        %v1855 = vld [vmem:[%s1837 + $0xc8] sm:$0xff]
        %v1856 = vld [vmem:[%s1837 + $0xd8] sm:$0xff]
        %v1857 = vld [vmem:[%s1837 + $0xe0] sm:$0xff]
        %v1858 = vld [vmem:[%s1837 + $0xf0] sm:$0xff]
        %v1859 = vld [vmem:[%s1837 + $0xf8] sm:$0xff]
        %v1860 = vld [vmem:[%s1837 + $0x108] sm:$0xff]
        %v1861 = vld [vmem:[%s1837 + $0x110] sm:$0xff]
        %v1862 = vld [vmem:[%s1837 + $0x120] sm:$0xff]
        %v1863 = vld [vmem:[%s1837 + $0x128] sm:$0xff]
        %v1864 = vld [vmem:[%s1837 + $0x138] sm:$0xff]
        %v1865 = vld [vmem:[%s1837 + $0x140] sm:$0xff]
        %v1866 = vld [vmem:[%s1837 + $0x150] sm:$0xff]
        %v1867 = vld [vmem:[%s1837 + $0x158] sm:$0xff]
        %v1868 = vld [vmem:[%s1837 + $0x168] sm:$0xff]
        %v1869 = vld [vmem:[%s1837 + $0x170] sm:$0xff]
        %s1870 = scalar_lea.vmem %s219, 24
        %v1871 = vld [vmem:[%s1870] sm:$0xf]
        %v1873 = vsel %vm294, %v1838, 0
        %v1876 = vsel %vm294, %v1839, 0
        %v1879 = vsel %vm294, %v1840, 0
        %v1882 = vsel %vm294, %v1841, 0
        %v1885 = vsel %vm294, %v1842, 0
        %v1888 = vsel %vm294, %v1843, 0
        %v1891 = vsel %vm294, %v1844, 0
        %v1894 = vsel %vm294, %v1845, 0
        %v1897 = vsel %vm294, %v1846, 0
        %v1900 = vsel %vm294, %v1847, 0
        %v1903 = vsel %vm294, %v1848, 0
        %v1906 = vsel %vm294, %v1849, 0
        %v1909 = vsel %vm294, %v1850, 0
        %v1912 = vsel %vm294, %v1851, 0
        %v1915 = vsel %vm294, %v1852, 0
        %v1918 = vsel %vm294, %v1853, 0
        %v1921 = vsel %vm294, %v1854, 0
        %v1924 = vsel %vm294, %v1855, 0
        %v1927 = vsel %vm294, %v1856, 0
        %v1930 = vsel %vm294, %v1857, 0
        %v1933 = vsel %vm294, %v1858, 0
        %v1936 = vsel %vm294, %v1859, 0
        %v1939 = vsel %vm294, %v1860, 0
        %v1942 = vsel %vm294, %v1861, 0
        %v1945 = vsel %vm294, %v1862, 0
        %v1948 = vsel %vm294, %v1863, 0
        %v1951 = vsel %vm294, %v1864, 0
        %v1954 = vsel %vm294, %v1865, 0
        %v1957 = vsel %vm294, %v1866, 0
        %v1960 = vsel %vm294, %v1867, 0
        %v1963 = vsel %vm294, %v1868, 0
        %v1966 = vsel %vm294, %v1869, 0
        %v1969 = vsel %vm391, %v1871, 0
        %1971 = vmatpush.msra.mxu0 0.0
        %1972 = vmatpush.msra.mxu0 0.0
        %1973 = vmatpush.msra.mxu0 0.0
        %1974 = vmatpush.msra.mxu0 0.0
        %1975 = vmatpush.msra.mxu0 0.0
        %1976 = vmatpush.msra.mxu0 0.0
        %1977 = vmatpush.msra.mxu0 0.0
        %1978 = vmatpush.msra.mxu0 0.0
        %1979 = vmatpush.msra.mxu0 0.0
        %1980 = vmatpush.msra.mxu0 0.0
        %1981 = vmatpush.msra.mxu0 0.0
        %1982 = vmatpush.msra.mxu0 0.0
        %1983 = vmatpush.msra.mxu0 0.0
        %1984 = vmatpush.msra.mxu0 0.0
        %1985 = vmatpush.msra.mxu0 0.0
        %1986 = vmatpush.msra.mxu0 %v1969
        %1987 = vmatmul.f32.gmra.mxu0 %v1873
        %v1988 = vpop.f32.mrf.mxu0
        %v1989 = vadd.f32 0.0, %v1988
        %1990 = vmatmul.f32.gmra.mxu0 %v1876
        %v1991 = vpop.f32.mrf.mxu0
        %v1992 = vadd.f32 0.0, %v1991
        %1993 = vmatmul.f32.gmra.mxu0 %v1879
        %v1994 = vpop.f32.mrf.mxu0
        %v1995 = vadd.f32 0.0, %v1994
        %1996 = vmatmul.f32.gmra.mxu0 %v1882
        %v1997 = vpop.f32.mrf.mxu0
        %v1998 = vadd.f32 0.0, %v1997
        %1999 = vmatmul.f32.gmra.mxu0 %v1885
        %v2000 = vpop.f32.mrf.mxu0
        %v2001 = vadd.f32 0.0, %v2000
        %2002 = vmatmul.f32.gmra.mxu0 %v1888
        %v2003 = vpop.f32.mrf.mxu0
        %v2004 = vadd.f32 0.0, %v2003
        %2005 = vmatmul.f32.gmra.mxu0 %v1891
        %v2006 = vpop.f32.mrf.mxu0
        %v2007 = vadd.f32 0.0, %v2006
        %2008 = vmatmul.f32.gmra.mxu0 %v1894
        %v2009 = vpop.f32.mrf.mxu0
        %v2010 = vadd.f32 0.0, %v2009
        %2011 = vmatmul.f32.gmra.mxu0 %v1897
        %v2012 = vpop.f32.mrf.mxu0
        %v2013 = vadd.f32 0.0, %v2012
        %2014 = vmatmul.f32.gmra.mxu0 %v1900
        %v2015 = vpop.f32.mrf.mxu0
        %v2016 = vadd.f32 0.0, %v2015
        %2017 = vmatmul.f32.gmra.mxu0 %v1903
        %v2018 = vpop.f32.mrf.mxu0
        %v2019 = vadd.f32 0.0, %v2018
        %2020 = vmatmul.f32.gmra.mxu0 %v1906
        %v2021 = vpop.f32.mrf.mxu0
        %v2022 = vadd.f32 0.0, %v2021
        %2023 = vmatmul.f32.gmra.mxu0 %v1909
        %v2024 = vpop.f32.mrf.mxu0
        %v2025 = vadd.f32 0.0, %v2024
        %2026 = vmatmul.f32.gmra.mxu0 %v1912
        %v2027 = vpop.f32.mrf.mxu0
        %v2028 = vadd.f32 0.0, %v2027
        %2029 = vmatmul.f32.gmra.mxu0 %v1915
        %v2030 = vpop.f32.mrf.mxu0
        %v2031 = vadd.f32 0.0, %v2030
        %2032 = vmatmul.f32.gmra.mxu0 %v1918
        %v2033 = vpop.f32.mrf.mxu0
        %v2034 = vadd.f32 0.0, %v2033
        %2035 = vmatmul.f32.gmra.mxu0 %v1921
        %v2036 = vpop.f32.mrf.mxu0
        %v2037 = vadd.f32 0.0, %v2036
        %2038 = vmatmul.f32.gmra.mxu0 %v1924
        %v2039 = vpop.f32.mrf.mxu0
        %v2040 = vadd.f32 0.0, %v2039
        %2041 = vmatmul.f32.gmra.mxu0 %v1927
        %v2042 = vpop.f32.mrf.mxu0
        %v2043 = vadd.f32 0.0, %v2042
        %2044 = vmatmul.f32.gmra.mxu0 %v1930
        %v2045 = vpop.f32.mrf.mxu0
        %v2046 = vadd.f32 0.0, %v2045
        %2047 = vmatmul.f32.gmra.mxu0 %v1933
        %v2048 = vpop.f32.mrf.mxu0
        %v2049 = vadd.f32 0.0, %v2048
        %2050 = vmatmul.f32.gmra.mxu0 %v1936
        %v2051 = vpop.f32.mrf.mxu0
        %v2052 = vadd.f32 0.0, %v2051
        %2053 = vmatmul.f32.gmra.mxu0 %v1939
        %v2054 = vpop.f32.mrf.mxu0
        %v2055 = vadd.f32 0.0, %v2054
        %2056 = vmatmul.f32.gmra.mxu0 %v1942
        %v2057 = vpop.f32.mrf.mxu0
        %v2058 = vadd.f32 0.0, %v2057
        %2059 = vmatmul.f32.gmra.mxu0 %v1945
        %v2060 = vpop.f32.mrf.mxu0
        %v2061 = vadd.f32 0.0, %v2060
        %2062 = vmatmul.f32.gmra.mxu0 %v1948
        %v2063 = vpop.f32.mrf.mxu0
        %v2064 = vadd.f32 0.0, %v2063
        %2065 = vmatmul.f32.gmra.mxu0 %v1951
        %v2066 = vpop.f32.mrf.mxu0
        %v2067 = vadd.f32 0.0, %v2066
        %2068 = vmatmul.f32.gmra.mxu0 %v1954
        %v2069 = vpop.f32.mrf.mxu0
        %v2070 = vadd.f32 0.0, %v2069
        %2071 = vmatmul.f32.gmra.mxu0 %v1957
        %v2072 = vpop.f32.mrf.mxu0
        %v2073 = vadd.f32 0.0, %v2072
        %2074 = vmatmul.f32.gmra.mxu0 %v1960
        %v2075 = vpop.f32.mrf.mxu0
        %v2076 = vadd.f32 0.0, %v2075
        %2077 = vmatmul.f32.gmra.mxu0 %v1963
        %v2078 = vpop.f32.mrf.mxu0
        %v2079 = vadd.f32 0.0, %v2078
        %2080 = vmatmul.f32.gmra.mxu0 %v1966
        %v2081 = vpop.f32.mrf.mxu0
        %v2082 = vadd.f32 0.0, %v2081
        %2083 = vdwg.mxu0
        %v2084 = vadd.f32 %v1803, %v1989
        %v2085 = vadd.f32 %v1804, %v1992
        %v2086 = vadd.f32 %v1805, %v1995
        %v2087 = vadd.f32 %v1806, %v1998
        %v2088 = vadd.f32 %v1807, %v2001
        %v2089 = vadd.f32 %v1808, %v2004
        %v2090 = vadd.f32 %v1809, %v2007
        %v2091 = vadd.f32 %v1810, %v2010
        %v2092 = vadd.f32 %v1811, %v2013
        %v2093 = vadd.f32 %v1812, %v2016
        %v2094 = vadd.f32 %v1813, %v2019
        %v2095 = vadd.f32 %v1814, %v2022
        %v2096 = vadd.f32 %v1815, %v2025
        %v2097 = vadd.f32 %v1816, %v2028
        %v2098 = vadd.f32 %v1817, %v2031
        %v2099 = vadd.f32 %v1818, %v2034
        %v2100 = vadd.f32 %v1819, %v2037
        %v2101 = vadd.f32 %v1820, %v2040
        %v2102 = vadd.f32 %v1821, %v2043
        %v2103 = vadd.f32 %v1822, %v2046
        %v2104 = vadd.f32 %v1823, %v2049
        %v2105 = vadd.f32 %v1824, %v2052
        %v2106 = vadd.f32 %v1825, %v2055
        %v2107 = vadd.f32 %v1826, %v2058
        %v2108 = vadd.f32 %v1827, %v2061
        %v2109 = vadd.f32 %v1828, %v2064
        %v2110 = vadd.f32 %v1829, %v2067
        %v2111 = vadd.f32 %v1830, %v2070
        %v2112 = vadd.f32 %v1831, %v2073
        %v2113 = vadd.f32 %v1832, %v2076
        %v2114 = vadd.f32 %v1833, %v2079
        %v2115 = vadd.f32 %v1834, %v2082
        %v2116 = vld [vmem:[%s1837 + $0x1] sm:$0xff]
        %v2117 = vld [vmem:[%s1837 + $0x9] sm:$0xff]
        %v2118 = vld [vmem:[%s1837 + $0x19] sm:$0xff]
        %v2119 = vld [vmem:[%s1837 + $0x21] sm:$0xff]
        %v2120 = vld [vmem:[%s1837 + $0x31] sm:$0xff]
        %v2121 = vld [vmem:[%s1837 + $0x39] sm:$0xff]
        %v2122 = vld [vmem:[%s1837 + $0x49] sm:$0xff]
        %v2123 = vld [vmem:[%s1837 + $0x51] sm:$0xff]
        %v2124 = vld [vmem:[%s1837 + $0x61] sm:$0xff]
        %v2125 = vld [vmem:[%s1837 + $0x69] sm:$0xff]
        %v2126 = vld [vmem:[%s1837 + $0x79] sm:$0xff]
        %v2127 = vld [vmem:[%s1837 + $0x81] sm:$0xff]
        %v2128 = vld [vmem:[%s1837 + $0x91] sm:$0xff]
        %v2129 = vld [vmem:[%s1837 + $0x99] sm:$0xff]
        %v2130 = vld [vmem:[%s1837 + $0xa9] sm:$0xff]
        %v2131 = vld [vmem:[%s1837 + $0xb1] sm:$0xff]
        %v2132 = vld [vmem:[%s1837 + $0xc1] sm:$0xff]
        %v2133 = vld [vmem:[%s1837 + $0xc9] sm:$0xff]
        %v2134 = vld [vmem:[%s1837 + $0xd9] sm:$0xff]
        %v2135 = vld [vmem:[%s1837 + $0xe1] sm:$0xff]
        %v2136 = vld [vmem:[%s1837 + $0xf1] sm:$0xff]
        %v2137 = vld [vmem:[%s1837 + $0xf9] sm:$0xff]
        %v2138 = vld [vmem:[%s1837 + $0x109] sm:$0xff]
        %v2139 = vld [vmem:[%s1837 + $0x111] sm:$0xff]
        %v2140 = vld [vmem:[%s1837 + $0x121] sm:$0xff]
        %v2141 = vld [vmem:[%s1837 + $0x129] sm:$0xff]
        %v2142 = vld [vmem:[%s1837 + $0x139] sm:$0xff]
        %v2143 = vld [vmem:[%s1837 + $0x141] sm:$0xff]
        %v2144 = vld [vmem:[%s1837 + $0x151] sm:$0xff]
        %v2145 = vld [vmem:[%s1837 + $0x159] sm:$0xff]
        %v2146 = vld [vmem:[%s1837 + $0x169] sm:$0xff]
        %v2147 = vld [vmem:[%s1837 + $0x171] sm:$0xff]
        %s2148 = scalar_lea.vmem %s219, 28
        %v2149 = vld [vmem:[%s2148] sm:$0xf]
        %v2151 = vsel %vm294, %v2116, 0
        %v2154 = vsel %vm294, %v2117, 0
        %v2157 = vsel %vm294, %v2118, 0
        %v2160 = vsel %vm294, %v2119, 0
        %v2163 = vsel %vm294, %v2120, 0
        %v2166 = vsel %vm294, %v2121, 0
        %v2169 = vsel %vm294, %v2122, 0
        %v2172 = vsel %vm294, %v2123, 0
        %v2175 = vsel %vm294, %v2124, 0
        %v2178 = vsel %vm294, %v2125, 0
        %v2181 = vsel %vm294, %v2126, 0
        %v2184 = vsel %vm294, %v2127, 0
        %v2187 = vsel %vm294, %v2128, 0
        %v2190 = vsel %vm294, %v2129, 0
        %v2193 = vsel %vm294, %v2130, 0
        %v2196 = vsel %vm294, %v2131, 0
        %v2199 = vsel %vm294, %v2132, 0
        %v2202 = vsel %vm294, %v2133, 0
        %v2205 = vsel %vm294, %v2134, 0
        %v2208 = vsel %vm294, %v2135, 0
        %v2211 = vsel %vm294, %v2136, 0
        %v2214 = vsel %vm294, %v2137, 0
        %v2217 = vsel %vm294, %v2138, 0
        %v2220 = vsel %vm294, %v2139, 0
        %v2223 = vsel %vm294, %v2140, 0
        %v2226 = vsel %vm294, %v2141, 0
        %v2229 = vsel %vm294, %v2142, 0
        %v2232 = vsel %vm294, %v2143, 0
        %v2235 = vsel %vm294, %v2144, 0
        %v2238 = vsel %vm294, %v2145, 0
        %v2241 = vsel %vm294, %v2146, 0
        %v2244 = vsel %vm294, %v2147, 0
        %v2247 = vsel %vm391, %v2149, 0
        %2249 = vmatpush.msra.mxu0 0.0
        %2250 = vmatpush.msra.mxu0 0.0
        %2251 = vmatpush.msra.mxu0 0.0
        %2252 = vmatpush.msra.mxu0 0.0
        %2253 = vmatpush.msra.mxu0 0.0
        %2254 = vmatpush.msra.mxu0 0.0
        %2255 = vmatpush.msra.mxu0 0.0
        %2256 = vmatpush.msra.mxu0 0.0
        %2257 = vmatpush.msra.mxu0 0.0
        %2258 = vmatpush.msra.mxu0 0.0
        %2259 = vmatpush.msra.mxu0 0.0
        %2260 = vmatpush.msra.mxu0 0.0
        %2261 = vmatpush.msra.mxu0 0.0
        %2262 = vmatpush.msra.mxu0 0.0
        %2263 = vmatpush.msra.mxu0 0.0
        %2264 = vmatpush.msra.mxu0 %v2247
        %2265 = vmatmul.f32.gmra.mxu0 %v2151
        %v2266 = vpop.f32.mrf.mxu0
        %v2267 = vadd.f32 0.0, %v2266
        %2268 = vmatmul.f32.gmra.mxu0 %v2154
        %v2269 = vpop.f32.mrf.mxu0
        %v2270 = vadd.f32 0.0, %v2269
        %2271 = vmatmul.f32.gmra.mxu0 %v2157
        %v2272 = vpop.f32.mrf.mxu0
        %v2273 = vadd.f32 0.0, %v2272
        %2274 = vmatmul.f32.gmra.mxu0 %v2160
        %v2275 = vpop.f32.mrf.mxu0
        %v2276 = vadd.f32 0.0, %v2275
        %2277 = vmatmul.f32.gmra.mxu0 %v2163
        %v2278 = vpop.f32.mrf.mxu0
        %v2279 = vadd.f32 0.0, %v2278
        %2280 = vmatmul.f32.gmra.mxu0 %v2166
        %v2281 = vpop.f32.mrf.mxu0
        %v2282 = vadd.f32 0.0, %v2281
        %2283 = vmatmul.f32.gmra.mxu0 %v2169
        %v2284 = vpop.f32.mrf.mxu0
        %v2285 = vadd.f32 0.0, %v2284
        %2286 = vmatmul.f32.gmra.mxu0 %v2172
        %v2287 = vpop.f32.mrf.mxu0
        %v2288 = vadd.f32 0.0, %v2287
        %2289 = vmatmul.f32.gmra.mxu0 %v2175
        %v2290 = vpop.f32.mrf.mxu0
        %v2291 = vadd.f32 0.0, %v2290
        %2292 = vmatmul.f32.gmra.mxu0 %v2178
        %v2293 = vpop.f32.mrf.mxu0
        %v2294 = vadd.f32 0.0, %v2293
        %2295 = vmatmul.f32.gmra.mxu0 %v2181
        %v2296 = vpop.f32.mrf.mxu0
        %v2297 = vadd.f32 0.0, %v2296
        %2298 = vmatmul.f32.gmra.mxu0 %v2184
        %v2299 = vpop.f32.mrf.mxu0
        %v2300 = vadd.f32 0.0, %v2299
        %2301 = vmatmul.f32.gmra.mxu0 %v2187
        %v2302 = vpop.f32.mrf.mxu0
        %v2303 = vadd.f32 0.0, %v2302
        %2304 = vmatmul.f32.gmra.mxu0 %v2190
        %v2305 = vpop.f32.mrf.mxu0
        %v2306 = vadd.f32 0.0, %v2305
        %2307 = vmatmul.f32.gmra.mxu0 %v2193
        %v2308 = vpop.f32.mrf.mxu0
        %v2309 = vadd.f32 0.0, %v2308
        %2310 = vmatmul.f32.gmra.mxu0 %v2196
        %v2311 = vpop.f32.mrf.mxu0
        %v2312 = vadd.f32 0.0, %v2311
        %2313 = vmatmul.f32.gmra.mxu0 %v2199
        %v2314 = vpop.f32.mrf.mxu0
        %v2315 = vadd.f32 0.0, %v2314
        %2316 = vmatmul.f32.gmra.mxu0 %v2202
        %v2317 = vpop.f32.mrf.mxu0
        %v2318 = vadd.f32 0.0, %v2317
        %2319 = vmatmul.f32.gmra.mxu0 %v2205
        %v2320 = vpop.f32.mrf.mxu0
        %v2321 = vadd.f32 0.0, %v2320
        %2322 = vmatmul.f32.gmra.mxu0 %v2208
        %v2323 = vpop.f32.mrf.mxu0
        %v2324 = vadd.f32 0.0, %v2323
        %2325 = vmatmul.f32.gmra.mxu0 %v2211
        %v2326 = vpop.f32.mrf.mxu0
        %v2327 = vadd.f32 0.0, %v2326
        %2328 = vmatmul.f32.gmra.mxu0 %v2214
        %v2329 = vpop.f32.mrf.mxu0
        %v2330 = vadd.f32 0.0, %v2329
        %2331 = vmatmul.f32.gmra.mxu0 %v2217
        %v2332 = vpop.f32.mrf.mxu0
        %v2333 = vadd.f32 0.0, %v2332
        %2334 = vmatmul.f32.gmra.mxu0 %v2220
        %v2335 = vpop.f32.mrf.mxu0
        %v2336 = vadd.f32 0.0, %v2335
        %2337 = vmatmul.f32.gmra.mxu0 %v2223
        %v2338 = vpop.f32.mrf.mxu0
        %v2339 = vadd.f32 0.0, %v2338
        %2340 = vmatmul.f32.gmra.mxu0 %v2226
        %v2341 = vpop.f32.mrf.mxu0
        %v2342 = vadd.f32 0.0, %v2341
        %2343 = vmatmul.f32.gmra.mxu0 %v2229
        %v2344 = vpop.f32.mrf.mxu0
        %v2345 = vadd.f32 0.0, %v2344
        %2346 = vmatmul.f32.gmra.mxu0 %v2232
        %v2347 = vpop.f32.mrf.mxu0
        %v2348 = vadd.f32 0.0, %v2347
        %2349 = vmatmul.f32.gmra.mxu0 %v2235
        %v2350 = vpop.f32.mrf.mxu0
        %v2351 = vadd.f32 0.0, %v2350
        %2352 = vmatmul.f32.gmra.mxu0 %v2238
        %v2353 = vpop.f32.mrf.mxu0
        %v2354 = vadd.f32 0.0, %v2353
        %2355 = vmatmul.f32.gmra.mxu0 %v2241
        %v2356 = vpop.f32.mrf.mxu0
        %v2357 = vadd.f32 0.0, %v2356
        %2358 = vmatmul.f32.gmra.mxu0 %v2244
        %v2359 = vpop.f32.mrf.mxu0
        %v2360 = vadd.f32 0.0, %v2359
        %2361 = vdwg.mxu0
        %v2362 = vadd.f32 %v2084, %v2267
        %v2363 = vadd.f32 %v2085, %v2270
        %v2364 = vadd.f32 %v2086, %v2273
        %v2365 = vadd.f32 %v2087, %v2276
        %v2366 = vadd.f32 %v2088, %v2279
        %v2367 = vadd.f32 %v2089, %v2282
        %v2368 = vadd.f32 %v2090, %v2285
        %v2369 = vadd.f32 %v2091, %v2288
        %v2370 = vadd.f32 %v2092, %v2291
        %v2371 = vadd.f32 %v2093, %v2294
        %v2372 = vadd.f32 %v2094, %v2297
        %v2373 = vadd.f32 %v2095, %v2300
        %v2374 = vadd.f32 %v2096, %v2303
        %v2375 = vadd.f32 %v2097, %v2306
        %v2376 = vadd.f32 %v2098, %v2309
        %v2377 = vadd.f32 %v2099, %v2312
        %v2378 = vadd.f32 %v2100, %v2315
        %v2379 = vadd.f32 %v2101, %v2318
        %v2380 = vadd.f32 %v2102, %v2321
        %v2381 = vadd.f32 %v2103, %v2324
        %v2382 = vadd.f32 %v2104, %v2327
        %v2383 = vadd.f32 %v2105, %v2330
        %v2384 = vadd.f32 %v2106, %v2333
        %v2385 = vadd.f32 %v2107, %v2336
        %v2386 = vadd.f32 %v2108, %v2339
        %v2387 = vadd.f32 %v2109, %v2342
        %v2388 = vadd.f32 %v2110, %v2345
        %v2389 = vadd.f32 %v2111, %v2348
        %v2390 = vadd.f32 %v2112, %v2351
        %v2391 = vadd.f32 %v2113, %v2354
        %v2392 = vadd.f32 %v2114, %v2357
        %v2393 = vadd.f32 %v2115, %v2360
        %v2394 = vld [vmem:[%s1837 + $0x2] sm:$0xff]
        %v2395 = vld [vmem:[%s1837 + $0xa] sm:$0xff]
        %v2396 = vld [vmem:[%s1837 + $0x1a] sm:$0xff]
        %v2397 = vld [vmem:[%s1837 + $0x22] sm:$0xff]
        %v2398 = vld [vmem:[%s1837 + $0x32] sm:$0xff]
        %v2399 = vld [vmem:[%s1837 + $0x3a] sm:$0xff]
        %v2400 = vld [vmem:[%s1837 + $0x4a] sm:$0xff]
        %v2401 = vld [vmem:[%s1837 + $0x52] sm:$0xff]
        %v2402 = vld [vmem:[%s1837 + $0x62] sm:$0xff]
        %v2403 = vld [vmem:[%s1837 + $0x6a] sm:$0xff]
        %v2404 = vld [vmem:[%s1837 + $0x7a] sm:$0xff]
        %v2405 = vld [vmem:[%s1837 + $0x82] sm:$0xff]
        %v2406 = vld [vmem:[%s1837 + $0x92] sm:$0xff]
        %v2407 = vld [vmem:[%s1837 + $0x9a] sm:$0xff]
        %v2408 = vld [vmem:[%s1837 + $0xaa] sm:$0xff]
        %v2409 = vld [vmem:[%s1837 + $0xb2] sm:$0xff]
        %v2410 = vld [vmem:[%s1837 + $0xc2] sm:$0xff]
        %v2411 = vld [vmem:[%s1837 + $0xca] sm:$0xff]
        %v2412 = vld [vmem:[%s1837 + $0xda] sm:$0xff]
        %v2413 = vld [vmem:[%s1837 + $0xe2] sm:$0xff]
        %v2414 = vld [vmem:[%s1837 + $0xf2] sm:$0xff]
        %v2415 = vld [vmem:[%s1837 + $0xfa] sm:$0xff]
        %v2416 = vld [vmem:[%s1837 + $0x10a] sm:$0xff]
        %v2417 = vld [vmem:[%s1837 + $0x112] sm:$0xff]
        %v2418 = vld [vmem:[%s1837 + $0x122] sm:$0xff]
        %v2419 = vld [vmem:[%s1837 + $0x12a] sm:$0xff]
        %v2420 = vld [vmem:[%s1837 + $0x13a] sm:$0xff]
        %v2421 = vld [vmem:[%s1837 + $0x142] sm:$0xff]
        %v2422 = vld [vmem:[%s1837 + $0x152] sm:$0xff]
        %v2423 = vld [vmem:[%s1837 + $0x15a] sm:$0xff]
        %v2424 = vld [vmem:[%s1837 + $0x16a] sm:$0xff]
        %v2425 = vld [vmem:[%s1837 + $0x172] sm:$0xff]
        %s2426 = scalar_lea.vmem %s219, 32
        %v2427 = vld [vmem:[%s2426] sm:$0xf]
        %v2429 = vsel %vm294, %v2394, 0
        %v2432 = vsel %vm294, %v2395, 0
        %v2435 = vsel %vm294, %v2396, 0
        %v2438 = vsel %vm294, %v2397, 0
        %v2441 = vsel %vm294, %v2398, 0
        %v2444 = vsel %vm294, %v2399, 0
        %v2447 = vsel %vm294, %v2400, 0
        %v2450 = vsel %vm294, %v2401, 0
        %v2453 = vsel %vm294, %v2402, 0
        %v2456 = vsel %vm294, %v2403, 0
        %v2459 = vsel %vm294, %v2404, 0
        %v2462 = vsel %vm294, %v2405, 0
        %v2465 = vsel %vm294, %v2406, 0
        %v2468 = vsel %vm294, %v2407, 0
        %v2471 = vsel %vm294, %v2408, 0
        %v2474 = vsel %vm294, %v2409, 0
        %v2477 = vsel %vm294, %v2410, 0
        %v2480 = vsel %vm294, %v2411, 0
        %v2483 = vsel %vm294, %v2412, 0
        %v2486 = vsel %vm294, %v2413, 0
        %v2489 = vsel %vm294, %v2414, 0
        %v2492 = vsel %vm294, %v2415, 0
        %v2495 = vsel %vm294, %v2416, 0
        %v2498 = vsel %vm294, %v2417, 0
        %v2501 = vsel %vm294, %v2418, 0
        %v2504 = vsel %vm294, %v2419, 0
        %v2507 = vsel %vm294, %v2420, 0
        %v2510 = vsel %vm294, %v2421, 0
        %v2513 = vsel %vm294, %v2422, 0
        %v2516 = vsel %vm294, %v2423, 0
        %v2519 = vsel %vm294, %v2424, 0
        %v2522 = vsel %vm294, %v2425, 0
        %v2525 = vsel %vm391, %v2427, 0
        %2527 = vmatpush.msra.mxu0 0.0
        %2528 = vmatpush.msra.mxu0 0.0
        %2529 = vmatpush.msra.mxu0 0.0
        %2530 = vmatpush.msra.mxu0 0.0
        %2531 = vmatpush.msra.mxu0 0.0
        %2532 = vmatpush.msra.mxu0 0.0
        %2533 = vmatpush.msra.mxu0 0.0
        %2534 = vmatpush.msra.mxu0 0.0
        %2535 = vmatpush.msra.mxu0 0.0
        %2536 = vmatpush.msra.mxu0 0.0
        %2537 = vmatpush.msra.mxu0 0.0
        %2538 = vmatpush.msra.mxu0 0.0
        %2539 = vmatpush.msra.mxu0 0.0
        %2540 = vmatpush.msra.mxu0 0.0
        %2541 = vmatpush.msra.mxu0 0.0
        %2542 = vmatpush.msra.mxu0 %v2525
        %2543 = vmatmul.f32.gmra.mxu0 %v2429
        %v2544 = vpop.f32.mrf.mxu0
        %v2545 = vadd.f32 0.0, %v2544
        %2546 = vmatmul.f32.gmra.mxu0 %v2432
        %v2547 = vpop.f32.mrf.mxu0
        %v2548 = vadd.f32 0.0, %v2547
        %2549 = vmatmul.f32.gmra.mxu0 %v2435
        %v2550 = vpop.f32.mrf.mxu0
        %v2551 = vadd.f32 0.0, %v2550
        %2552 = vmatmul.f32.gmra.mxu0 %v2438
        %v2553 = vpop.f32.mrf.mxu0
        %v2554 = vadd.f32 0.0, %v2553
        %2555 = vmatmul.f32.gmra.mxu0 %v2441
        %v2556 = vpop.f32.mrf.mxu0
        %v2557 = vadd.f32 0.0, %v2556
        %2558 = vmatmul.f32.gmra.mxu0 %v2444
        %v2559 = vpop.f32.mrf.mxu0
        %v2560 = vadd.f32 0.0, %v2559
        %2561 = vmatmul.f32.gmra.mxu0 %v2447
        %v2562 = vpop.f32.mrf.mxu0
        %v2563 = vadd.f32 0.0, %v2562
        %2564 = vmatmul.f32.gmra.mxu0 %v2450
        %v2565 = vpop.f32.mrf.mxu0
        %v2566 = vadd.f32 0.0, %v2565
        %2567 = vmatmul.f32.gmra.mxu0 %v2453
        %v2568 = vpop.f32.mrf.mxu0
        %v2569 = vadd.f32 0.0, %v2568
        %2570 = vmatmul.f32.gmra.mxu0 %v2456
        %v2571 = vpop.f32.mrf.mxu0
        %v2572 = vadd.f32 0.0, %v2571
        %2573 = vmatmul.f32.gmra.mxu0 %v2459
        %v2574 = vpop.f32.mrf.mxu0
        %v2575 = vadd.f32 0.0, %v2574
        %2576 = vmatmul.f32.gmra.mxu0 %v2462
        %v2577 = vpop.f32.mrf.mxu0
        %v2578 = vadd.f32 0.0, %v2577
        %2579 = vmatmul.f32.gmra.mxu0 %v2465
        %v2580 = vpop.f32.mrf.mxu0
        %v2581 = vadd.f32 0.0, %v2580
        %2582 = vmatmul.f32.gmra.mxu0 %v2468
        %v2583 = vpop.f32.mrf.mxu0
        %v2584 = vadd.f32 0.0, %v2583
        %2585 = vmatmul.f32.gmra.mxu0 %v2471
        %v2586 = vpop.f32.mrf.mxu0
        %v2587 = vadd.f32 0.0, %v2586
        %2588 = vmatmul.f32.gmra.mxu0 %v2474
        %v2589 = vpop.f32.mrf.mxu0
        %v2590 = vadd.f32 0.0, %v2589
        %2591 = vmatmul.f32.gmra.mxu0 %v2477
        %v2592 = vpop.f32.mrf.mxu0
        %v2593 = vadd.f32 0.0, %v2592
        %2594 = vmatmul.f32.gmra.mxu0 %v2480
        %v2595 = vpop.f32.mrf.mxu0
        %v2596 = vadd.f32 0.0, %v2595
        %2597 = vmatmul.f32.gmra.mxu0 %v2483
        %v2598 = vpop.f32.mrf.mxu0
        %v2599 = vadd.f32 0.0, %v2598
        %2600 = vmatmul.f32.gmra.mxu0 %v2486
        %v2601 = vpop.f32.mrf.mxu0
        %v2602 = vadd.f32 0.0, %v2601
        %2603 = vmatmul.f32.gmra.mxu0 %v2489
        %v2604 = vpop.f32.mrf.mxu0
        %v2605 = vadd.f32 0.0, %v2604
        %2606 = vmatmul.f32.gmra.mxu0 %v2492
        %v2607 = vpop.f32.mrf.mxu0
        %v2608 = vadd.f32 0.0, %v2607
        %2609 = vmatmul.f32.gmra.mxu0 %v2495
        %v2610 = vpop.f32.mrf.mxu0
        %v2611 = vadd.f32 0.0, %v2610
        %2612 = vmatmul.f32.gmra.mxu0 %v2498
        %v2613 = vpop.f32.mrf.mxu0
        %v2614 = vadd.f32 0.0, %v2613
        %2615 = vmatmul.f32.gmra.mxu0 %v2501
        %v2616 = vpop.f32.mrf.mxu0
        %v2617 = vadd.f32 0.0, %v2616
        %2618 = vmatmul.f32.gmra.mxu0 %v2504
        %v2619 = vpop.f32.mrf.mxu0
        %v2620 = vadd.f32 0.0, %v2619
        %2621 = vmatmul.f32.gmra.mxu0 %v2507
        %v2622 = vpop.f32.mrf.mxu0
        %v2623 = vadd.f32 0.0, %v2622
        %2624 = vmatmul.f32.gmra.mxu0 %v2510
        %v2625 = vpop.f32.mrf.mxu0
        %v2626 = vadd.f32 0.0, %v2625
        %2627 = vmatmul.f32.gmra.mxu0 %v2513
        %v2628 = vpop.f32.mrf.mxu0
        %v2629 = vadd.f32 0.0, %v2628
        %2630 = vmatmul.f32.gmra.mxu0 %v2516
        %v2631 = vpop.f32.mrf.mxu0
        %v2632 = vadd.f32 0.0, %v2631
        %2633 = vmatmul.f32.gmra.mxu0 %v2519
        %v2634 = vpop.f32.mrf.mxu0
        %v2635 = vadd.f32 0.0, %v2634
        %2636 = vmatmul.f32.gmra.mxu0 %v2522
        %v2637 = vpop.f32.mrf.mxu0
        %v2638 = vadd.f32 0.0, %v2637
        %2639 = vdwg.mxu0
        %v2640 = vadd.f32 %v2362, %v2545
        %v2641 = vadd.f32 %v2363, %v2548
        %v2642 = vadd.f32 %v2364, %v2551
        %v2643 = vadd.f32 %v2365, %v2554
        %v2644 = vadd.f32 %v2366, %v2557
        %v2645 = vadd.f32 %v2367, %v2560
        %v2646 = vadd.f32 %v2368, %v2563
        %v2647 = vadd.f32 %v2369, %v2566
        %v2648 = vadd.f32 %v2370, %v2569
        %v2649 = vadd.f32 %v2371, %v2572
        %v2650 = vadd.f32 %v2372, %v2575
        %v2651 = vadd.f32 %v2373, %v2578
        %v2652 = vadd.f32 %v2374, %v2581
        %v2653 = vadd.f32 %v2375, %v2584
        %v2654 = vadd.f32 %v2376, %v2587
        %v2655 = vadd.f32 %v2377, %v2590
        %v2656 = vadd.f32 %v2378, %v2593
        %v2657 = vadd.f32 %v2379, %v2596
        %v2658 = vadd.f32 %v2380, %v2599
        %v2659 = vadd.f32 %v2381, %v2602
        %v2660 = vadd.f32 %v2382, %v2605
        %v2661 = vadd.f32 %v2383, %v2608
        %v2662 = vadd.f32 %v2384, %v2611
        %v2663 = vadd.f32 %v2385, %v2614
        %v2664 = vadd.f32 %v2386, %v2617
        %v2665 = vadd.f32 %v2387, %v2620
        %v2666 = vadd.f32 %v2388, %v2623
        %v2667 = vadd.f32 %v2389, %v2626
        %v2668 = vadd.f32 %v2390, %v2629
        %v2669 = vadd.f32 %v2391, %v2632
        %v2670 = vadd.f32 %v2392, %v2635
        %v2671 = vadd.f32 %v2393, %v2638
        %v2672 = vld [vmem:[%s222] sm:$0x1]
        %v2674 = vperm.slane %v2672, 0
        %v2676 = vadd.f32 %v2640, %v2674
        %v2677 = vadd.f32 %v2641, %v2674
        %v2678 = vadd.f32 %v2642, %v2674
        %v2679 = vadd.f32 %v2643, %v2674
        %v2680 = vadd.f32 %v2644, %v2674
        %v2681 = vadd.f32 %v2645, %v2674
        %v2682 = vadd.f32 %v2646, %v2674
        %v2683 = vadd.f32 %v2647, %v2674
        %v2684 = vadd.f32 %v2648, %v2674
        %v2685 = vadd.f32 %v2649, %v2674
        %v2686 = vadd.f32 %v2650, %v2674
        %v2687 = vadd.f32 %v2651, %v2674
        %v2688 = vadd.f32 %v2652, %v2674
        %v2689 = vadd.f32 %v2653, %v2674
        %v2690 = vadd.f32 %v2654, %v2674
        %v2691 = vadd.f32 %v2655, %v2674
        %v2692 = vadd.f32 %v2656, %v2674
        %v2693 = vadd.f32 %v2657, %v2674
        %v2694 = vadd.f32 %v2658, %v2674
        %v2695 = vadd.f32 %v2659, %v2674
        %v2696 = vadd.f32 %v2660, %v2674
        %v2697 = vadd.f32 %v2661, %v2674
        %v2698 = vadd.f32 %v2662, %v2674
        %v2699 = vadd.f32 %v2663, %v2674
        %v2700 = vadd.f32 %v2664, %v2674
        %v2701 = vadd.f32 %v2665, %v2674
        %v2702 = vadd.f32 %v2666, %v2674
        %v2703 = vadd.f32 %v2667, %v2674
        %v2704 = vadd.f32 %v2668, %v2674
        %v2705 = vadd.f32 %v2669, %v2674
        %v2706 = vadd.f32 %v2670, %v2674
        %v2707 = vadd.f32 %v2671, %v2674
        %v2708 = vmax.f32 %v2676, 0.0
        %v2709 = vmax.f32 %v2677, 0.0
        %v2710 = vmax.f32 %v2678, 0.0
        %v2711 = vmax.f32 %v2679, 0.0
        %v2712 = vmax.f32 %v2680, 0.0
        %v2713 = vmax.f32 %v2681, 0.0
        %v2714 = vmax.f32 %v2682, 0.0
        %v2715 = vmax.f32 %v2683, 0.0
        %v2716 = vmax.f32 %v2684, 0.0
        %v2717 = vmax.f32 %v2685, 0.0
        %v2718 = vmax.f32 %v2686, 0.0
        %v2719 = vmax.f32 %v2687, 0.0
        %v2720 = vmax.f32 %v2688, 0.0
        %v2721 = vmax.f32 %v2689, 0.0
        %v2722 = vmax.f32 %v2690, 0.0
        %v2723 = vmax.f32 %v2691, 0.0
        %v2724 = vmax.f32 %v2692, 0.0
        %v2725 = vmax.f32 %v2693, 0.0
        %v2726 = vmax.f32 %v2694, 0.0
        %v2727 = vmax.f32 %v2695, 0.0
        %v2728 = vmax.f32 %v2696, 0.0
        %v2729 = vmax.f32 %v2697, 0.0
        %v2730 = vmax.f32 %v2698, 0.0
        %v2731 = vmax.f32 %v2699, 0.0
        %v2732 = vmax.f32 %v2700, 0.0
        %v2733 = vmax.f32 %v2701, 0.0
        %v2734 = vmax.f32 %v2702, 0.0
        %v2735 = vmax.f32 %v2703, 0.0
        %v2736 = vmax.f32 %v2704, 0.0
        %v2737 = vmax.f32 %v2705, 0.0
        %v2738 = vmax.f32 %v2706, 0.0
        %v2739 = vmax.f32 %v2707, 0.0
        %2740 = vst [vmem:[%s210] sm:$0xff] %v2708
        %2741 = vst [vmem:[%s210 + $0x8] sm:$0xff] %v2709
        %2742 = vst [vmem:[%s210 + $0x10] sm:$0xff] %v2710
        %2743 = vst [vmem:[%s210 + $0x18] sm:$0xff] %v2711
        %2744 = vst [vmem:[%s210 + $0x20] sm:$0xff] %v2712
        %2745 = vst [vmem:[%s210 + $0x28] sm:$0xff] %v2713
        %2746 = vst [vmem:[%s210 + $0x30] sm:$0xff] %v2714
        %2747 = vst [vmem:[%s210 + $0x38] sm:$0xff] %v2715
        %2748 = vst [vmem:[%s210 + $0x40] sm:$0xff] %v2716
        %2749 = vst [vmem:[%s210 + $0x48] sm:$0xff] %v2717
        %2750 = vst [vmem:[%s210 + $0x50] sm:$0xff] %v2718
        %2751 = vst [vmem:[%s210 + $0x58] sm:$0xff] %v2719
        %2752 = vst [vmem:[%s210 + $0x60] sm:$0xff] %v2720
        %2753 = vst [vmem:[%s210 + $0x68] sm:$0xff] %v2721
        %2754 = vst [vmem:[%s210 + $0x70] sm:$0xff] %v2722
        %2755 = vst [vmem:[%s210 + $0x78] sm:$0xff] %v2723
        %2756 = vst [vmem:[%s210 + $0x80] sm:$0xff] %v2724
        %2757 = vst [vmem:[%s210 + $0x88] sm:$0xff] %v2725
        %2758 = vst [vmem:[%s210 + $0x90] sm:$0xff] %v2726
        %2759 = vst [vmem:[%s210 + $0x98] sm:$0xff] %v2727
        %2760 = vst [vmem:[%s210 + $0xa0] sm:$0xff] %v2728
        %2761 = vst [vmem:[%s210 + $0xa8] sm:$0xff] %v2729
        %2762 = vst [vmem:[%s210 + $0xb0] sm:$0xff] %v2730
        %2763 = vst [vmem:[%s210 + $0xb8] sm:$0xff] %v2731
        %2764 = vst [vmem:[%s210 + $0xc0] sm:$0xff] %v2732
        %2765 = vst [vmem:[%s210 + $0xc8] sm:$0xff] %v2733
        %2766 = vst [vmem:[%s210 + $0xd0] sm:$0xff] %v2734
        %2767 = vst [vmem:[%s210 + $0xd8] sm:$0xff] %v2735
        %2768 = vst [vmem:[%s210 + $0xe0] sm:$0xff] %v2736
        %2769 = vst [vmem:[%s210 + $0xe8] sm:$0xff] %v2737
        %2770 = vst [vmem:[%s210 + $0xf0] sm:$0xff] %v2738
        %2771 = vst [vmem:[%s210 + $0xf8] sm:$0xff] %v2739
        %s2772 = sand.u32 %s126, 1
        %s2773 = scalar_lea.sflag [#allocation3], %s2772
        %s2774 = sand.u32 %s126, 1
        %s2775 = smul.addr %s2774, 256
        %s2776 = scalar_lea.vmem [#allocation2], %s2775
        // Predicated region
        $region33: #{tpu_custom_call.1} parent=31 // pred_check
          %p2777 = pneg %p136
        $region34: #{tpu_custom_call.1} parent=31 // pred_check_branch
          %2779 = sbr.rel (%p2777) target = $region36
        $region35: #{tpu_custom_call.1} parent=31 // pred_region
          %s2780 = smul.u32 16, %s24
          %2782 = vsyncadd %s2773, 0
          %s2783 = smul.addr %s2780, 2
          %s2784 = sadd.s32 %s23, %s2783
          %s2785 = smul.addr %s22, 32
          %s2786 = sadd.s32 %s2784, %s2785
          %s2787 = smul.addr %s2786, 8
          %s2788 = scalar_lea.hbm %s3, %s2787
          %s2789 = sshll.u32 %s2776, 4
          %s2790 = int_to_ptr.vmem [resolvable:$true] %s2789
          %s2791 = sshll.u32 %s2788, 4
          %s2792 = int_to_ptr.hbm [resolvable:$true] %s2791
          %2797 = dma.vmem_to_hbm [thread:$0]  %s2790, 4096, %s2792, %s2773, 128, 128, 8
        $region36: #{tpu_custom_call.1} parent=31 // pred_fallthru
          _
      $region32: #{tpu_custom_call.1} parent=5 // pred_fallthru
        _
      %p2798 = scmp.le.s32.totalorder 2, %s12
      // Predicated region
      $region37: #{tpu_custom_call.1} parent=5 // pred_check
        %p2799 = pneg %p2798
      $region38: #{tpu_custom_call.1} parent=5 // pred_check_branch
        %2801 = sbr.rel (%p2799) target = $region40
      $region39: #{tpu_custom_call.1} parent=5 // pred_region
        %s2802 = ssub.s32 %s12, 2
        // Predicated region
        $region41: #{tpu_custom_call.1} parent=39 // pred_check
          %p2803 = pneg %p142
        $region42: #{tpu_custom_call.1} parent=39 // pred_check_branch
          %2805 = sbr.rel (%p2803) target = $region44
        $region43: #{tpu_custom_call.1} parent=39 // pred_region
          %s2806 = sand.u32 %s127, 1
          %s2807 = scalar_lea.sflag [#allocation3], %s2806
          %s2808 = sand.u32 %s127, 1
          %s2809 = smul.addr %s2808, 256
          %s2810 = scalar_lea.vmem [#allocation2], %s2809
          %2812 = dma.done %s2807, 4096
        $region44: #{tpu_custom_call.1} parent=39 // pred_fallthru
          _
      $region40: #{tpu_custom_call.1} parent=5 // pred_fallthru
        _
    $region6: #{tpu_custom_call.1} parent=1 // loop_footer
      %s16 = sadd.s32 1, %s12
    $region7: #{tpu_custom_call.1} parent=1 // loop_footer_branch
      %11 = sbr.rel target = $region3
    $region8: #{tpu_custom_call.1} parent=1 // loop_exit
      _
    %2813 = vsyncpa [#allocation3], 1
    %s2814 = scalar_lea.sflag [#allocation3], 1
    %2815 = vsyncpa %s2814, 1

</llo_original>
